<compile_context>
chip_gen: v7x
topology: tpu7x:2x2x1
jax: 0.10.0
libtpu: 0.0.40
codegen_flags: <defaults>
</compile_context>

<pallas_src>
import functools

import jax
import jax.numpy as jnp
from jax.experimental import pallas as pl
from jax.experimental.pallas import tpu as pltpu

_EPS = 1e-5
_LANE_PAD = 128    # zero lane tail: rolled tap views never wrap into valid columns
_SUBLANE = 8


# ----------------------------------------------------------------------------
# The fused kernel
# ----------------------------------------------------------------------------
def _discriminator_kernel(x_ref, w1_ref, w2_ref, w3_ref, bn_ref, mask_ref,
                          wlin_ref, o_ref, *, shifts, counts):
    """Operands:
       x_ref    : [Cin0_pad, Ltot] f32  flat input (zero channel rows / lane tail)
       w{1,2,3} : [Cout, 9*Cin]    bf16 K-stacked conv taps (tap-major, channel-minor)
       bn_ref   : [hch, 8]         f32  cols 0..3 = g1,t1,g2,t2; [0,4..6] = g3,t3,b_lin
       mask_ref : [3, Ltot]        f32  per-layer valid-position masks (zero tail)
       wlin_ref : [Ltot, N]        f32  block-diagonal Linear weights (zero elsewhere)
       o_ref    : [1, N]           f32  lane-dense logits
    """
    ltot = x_ref.shape[1]

    def conv_bn(act, w, gamma, beta, mask, count):
        # KxK "valid" conv == ONE MXU dot: K-stacked taps  x  sublane-stacked
        # lane-rolled views of the flat activation (rolls run on the idle XLU).
        stacked = jnp.concatenate(
            [act if s == 0 else pltpu.roll(act, ltot - s, axis=1) for s in shifts],
            axis=0)                                             # [9*Cin, Ltot] f32
        y = jnp.dot(w, stacked.astype(jnp.bfloat16),
                    preferred_element_type=jnp.float32)         # [Cout, Ltot] f32
        # Training-mode BatchNorm over the masked valid region, single pass.
        # (Conv bias omitted: it cancels exactly against the subtracted batch mean.)
        inv = 1.0 / count
        mean = jnp.sum(y * mask, axis=1, keepdims=True) * inv
        ex2 = jnp.sum(y * y * mask, axis=1, keepdims=True) * inv
        var = ex2 - mean * mean
        return (y - mean) * jax.lax.rsqrt(var + _EPS) * gamma + beta

    def group_sort2(y):
        # Channels are stored de-interleaved (permutation folded into the weights on
        # the host), so the GroupSort(2) partner of row g is row g +/- C/2:
        # one sublane roll + elementwise min/max + row select, all full-tile ops.
        half = y.shape[0] // 2
        partner = pltpu.roll(y, half, axis=0)
        rows = jax.lax.broadcasted_iota(jnp.int32, y.shape, 0)
        return jnp.where(rows < half, jnp.minimum(y, partner),
                         jnp.maximum(y, partner))

    m1 = mask_ref[0:1, :]
    m2 = mask_ref[1:2, :]
    m3 = mask_ref[2:3, :]
    g1, t1 = bn_ref[:, 0:1], bn_ref[:, 1:2]
    g2, t2 = bn_ref[:, 2:3], bn_ref[:, 3:4]
    g3, t3 = bn_ref[0:1, 4:5], bn_ref[0:1, 5:6]
    b_lin = bn_ref[0:1, 6:7]

    # Block 1 / 2: Conv -> BN -> GroupSort(2); activations stay as VMEM/vreg values.
    y1 = group_sort2(conv_bn(x_ref[...], w1_ref[...], g1, t1, m1, counts[0]))
    y2 = group_sort2(conv_bn(y1, w2_ref[...], g2, t2, m2, counts[1]))
    # Block 3: Conv (-> 1 channel) -> BN (1-channel, repaired semantics).
    # TODO(synk): GroupSort(2) after the 1-channel conv is ill-defined; identity.
    y3 = conv_bn(y2, w3_ref[...], g3, t3, m3, counts[2])        # [1, Ltot]

    # Output head: flatten(valid region) -> Linear(feat, 1) as one dot against the
    # block-diagonal per-sample weight matrix; lane-dense (1, N) VMEM output.
    o_ref[...] = (jnp.dot(y3, wlin_ref[...], preferred_element_type=jnp.float32)
                  + b_lin)


# ----------------------------------------------------------------------------
# Host-side parameter construction / packing (done once, outside the forward)
# ----------------------------------------------------------------------------
def _deinterleave_perm(c):
    # storage order = even channels, then odd channels
    return jnp.array(list(range(0, c, 2)) + list(range(1, c, 2)), dtype=jnp.int32)


def init_params(key, in_channels, h_channels, out_channels, kernel_size, spatial):
    """PyTorch-default init.  Note: the ctor's `in_channels` is unused by the
    reference module - its first conv consumes `out_channels` channels."""
    del in_channels  # unused by the reference module (see header)

    def init_conv(k, cout, cin, ks):
        kw_, kb_ = jax.random.split(k)
        fan_in = cin * ks * ks
        bound = 1.0 / jnp.sqrt(jnp.float32(fan_in))
        w = jax.random.uniform(kw_, (cout, cin, ks, ks), jnp.float32, -bound, bound)
        b = jax.random.uniform(kb_, (cout,), jnp.float32, -bound, bound)
        return w, b

    k1, k2, k3, k4 = jax.random.split(key, 4)
    p = {}
    p["w1"], p["b1"] = init_conv(k1, h_channels, out_channels, kernel_size)
    p["w2"], p["b2"] = init_conv(k2, h_channels, h_channels, kernel_size)
    p["w3"], p["b3"] = init_conv(k3, 1, h_channels, kernel_size)
    p["bn1_g"], p["bn1_b"] = jnp.ones((h_channels,)), jnp.zeros((h_channels,))
    p["bn2_g"], p["bn2_b"] = jnp.ones((h_channels,)), jnp.zeros((h_channels,))
    # TODO(synk): reference declares BN(num_features=h_channels) here, which would
    # raise on the 1-channel conv3 output; a 1-channel BN is used instead.
    p["bn3_g"], p["bn3_b"] = jnp.ones((1,)), jnp.zeros((1,))
    # TODO(synk): nn.Linear(in_channels=..., out_channels=..., kernel_size=...) is an
    # invalid signature; interpreted as flatten -> Linear(feat, 1).
    feat = (spatial - 3 * (kernel_size - 1)) ** 2
    kw_, kb_ = jax.random.split(k4)
    bound = 1.0 / jnp.sqrt(jnp.float32(feat))
    p["w_lin"] = jax.random.uniform(kw_, (feat, 1), jnp.float32, -bound, bound)
    p["b_lin"] = jax.random.uniform(kb_, (1,), jnp.float32, -bound, bound)
    return p


def pack_params(params, batch, spatial, kernel_size):
    """Packs the module parameters for the fused kernel:
       * GroupSort channel de-interleave folded into conv weights / BN params,
       * conv taps K-stacked into [Cout, K*K*Cin] bf16 slabs (conv biases dropped:
         training-mode BN cancels them exactly),
       * per-layer valid-position masks stacked into one [3, Ltot] array,
       * Linear weights as a block-diagonal [Ltot, N] matrix scattered onto the
         padded grid (zero at invalid positions); Linear bias rides in the BN slab.
    """
    n, hg, wg, k = batch, spatial, spatial, kernel_size
    hw = hg * wg
    L = n * hw
    hch, c0 = params["w1"].shape[0], params["w1"].shape[1]
    c0p = -(-c0 // _SUBLANE) * _SUBLANE
    assert hch % 2 == 0, "GroupSort(2) needs an even channel count"
    assert _LANE_PAD >= (k - 1) * (wg + 1), "lane pad must cover the max tap shift"
    perm = _deinterleave_perm(hch)

    oh1, ow1 = hg - (k - 1), wg - (k - 1)
    oh2, ow2 = oh1 - (k - 1), ow1 - (k - 1)
    oh3, ow3 = oh2 - (k - 1), ow2 - (k - 1)

    def stack_taps(w):
        # [cout, cin, kh, kw] -> bf16 [cout, kh*kw*cin], tap-major / channel-minor,
        # matching the in-kernel sublane-stacked rolled-activation operand.
        cout, cin, kh, kw = w.shape
        return (jnp.transpose(w, (0, 2, 3, 1))
                .reshape(cout, kh * kw * cin).astype(jnp.bfloat16))

    w1 = params["w1"][perm]                                     # output-channel perm
    w1 = jnp.pad(w1, ((0, 0), (0, c0p - c0), (0, 0), (0, 0)))   # pad in-channels to 8
    w2 = params["w2"][perm][:, perm]                            # out- and in-perm
    w3 = params["w3"][:, perm]                                  # in-perm only

    def mask_row(oh, ow):
        m = ((jnp.arange(hg) < oh)[:, None] &
             (jnp.arange(wg) < ow)[None, :]).astype(jnp.float32)
        row = jnp.tile(m.reshape(1, hw), (1, n))                # [1, L]
        return jnp.pad(row, ((0, 0), (0, _LANE_PAD)))           # [1, L + pad]

    masks = jnp.concatenate(
        [mask_row(oh1, ow1), mask_row(oh2, ow2), mask_row(oh3, ow3)], axis=0)

    # BN affine params (+ Linear bias) packed into one small [hch, 8] slab.
    bn = jnp.zeros((hch, 8), jnp.float32)
    bn = bn.at[:, 0].set(params["bn1_g"][perm]).at[:, 1].set(params["bn1_b"][perm])
    bn = bn.at[:, 2].set(params["bn2_g"][perm]).at[:, 3].set(params["bn2_b"][perm])
    bn = bn.at[0, 4].set(params["bn3_g"][0]).at[0, 5].set(params["bn3_b"][0])
    bn = bn.at[0, 6].set(params["b_lin"][0])

    # Block-diagonal Linear weights: column s holds w_lin scattered onto sample s's
    # valid grid positions (reference flatten order); zero elsewhere, so garbage /
    # tail positions of the layer-3 activation contribute exactly 0.
    wl = params["w_lin"].reshape(oh3, ow3)
    per_sample = jnp.zeros((hg, wg), jnp.float32).at[:oh3, :ow3].set(wl).reshape(hw)
    wlin = jnp.kron(jnp.eye(n, dtype=jnp.float32), per_sample[:, None])   # [L, n]
    wlin = jnp.pad(wlin, ((0, _LANE_PAD), (0, 0)))                        # [L+pad, n]

    return dict(
        batch=n, spatial=spatial, kernel_size=k, c0=c0, c0_pad=c0p,
        counts=(float(n * oh1 * ow1), float(n * oh2 * ow2), float(n * oh3 * ow3)),
        w1=stack_taps(w1), w2=stack_taps(w2), w3=stack_taps(w3),
        bn=bn, masks=masks, wlin=wlin)


# ----------------------------------------------------------------------------
# Forward: one fused pallas_call
# ----------------------------------------------------------------------------
def discriminator_forward(packed, x):
    n, c0, hg, wg = x.shape
    assert (n, hg, wg, c0) == (packed["batch"], packed["spatial"],
                               packed["spatial"], packed["c0"])
    k = packed["kernel_size"]
    L = n * hg * wg

    # [N, C, H, W] -> lane-dense [C (padded to 8), N*H*W (+ zero lane tail)].
    x_flat = jnp.transpose(x.astype(jnp.float32), (1, 0, 2, 3)).reshape(c0, L)
    x_flat = jnp.pad(x_flat, ((0, packed["c0_pad"] - c0), (0, _LANE_PAD)))

    shifts = tuple(i * wg + j for i in range(k) for j in range(k))
    kernel = functools.partial(_discriminator_kernel,
                               shifts=shifts, counts=packed["counts"])

    vmem = pl.BlockSpec(memory_space=pltpu.MemorySpace.VMEM)
    out = pl.pallas_call(
        kernel,
        out_shape=jax.ShapeDtypeStruct((1, n), jnp.float32),
        in_specs=[vmem] * 7,
        out_specs=vmem,
        # Actual footprint (operands + compiler temporaries) is ~1.5 MiB; sized with
        # headroom instead of a blanket 32 MiB so XLA can co-schedule around it.
        compiler_params=pltpu.CompilerParams(vmem_limit_bytes=8 * 1024 * 1024),
    )(x_flat, packed["w1"], packed["w2"], packed["w3"],
      packed["bn"], packed["masks"], packed["wlin"])
    return out.reshape(n, 1)     # lane-dense (1, N) kernel output -> (N, 1)


# ----------------------------------------------------------------------------
# Pure-JAX reference of the same (repaired) semantics, for self-checking
# ----------------------------------------------------------------------------
def _reference_forward(params, x):
    def conv(v, w, b):
        y = jax.lax.conv_general_dilated(
            v, w, window_strides=(1, 1), padding="VALID",
            dimension_numbers=("NCHW", "OIHW", "NCHW"),
            precision=jax.lax.Precision.HIGHEST)
        return y + b.reshape(1, -1, 1, 1)

    def bn(v, g, bt):
        mean = jnp.mean(v, axis=(0, 2, 3), keepdims=True)
        var = jnp.var(v, axis=(0, 2, 3), keepdims=True)   # biased, as in torch BN
        return ((v - mean) * jax.lax.rsqrt(var + _EPS) * g.reshape(1, -1, 1, 1)
                + bt.reshape(1, -1, 1, 1))

    def group_sort2(v):
        nb, c, hh, ww = v.shape
        return jnp.sort(v.reshape(nb, c // 2, 2, hh, ww), axis=2).reshape(nb, c, hh, ww)

    y = group_sort2(bn(conv(x, params["w1"], params["b1"]),
                       params["bn1_g"], params["bn1_b"]))
    y = group_sort2(bn(conv(y, params["w2"], params["b2"]),
                       params["bn2_g"], params["bn2_b"]))
    y = bn(conv(y, params["w3"], params["b3"]), params["bn3_g"], params["bn3_b"])
    flat = y.reshape(y.shape[0], -1)
    return jnp.dot(flat, params["w_lin"],
                   precision=jax.lax.Precision.HIGHEST) + params["b_lin"]


if __name__ == "__main__":
    # Small shapes consistent with the module: x has `out_channels` channels (NCHW).
    in_channels, h_channels, out_channels, kernel_size = 4, 8, 4, 3
    batch, spatial = 2, 16

    key = jax.random.PRNGKey(0)
    k_x, k_p = jax.random.split(key)
    x = jax.random.normal(k_x, (batch, out_channels, spatial, spatial), jnp.float32)

    params = init_params(k_p, in_channels, h_channels, out_channels,
                         kernel_size, spatial)
    packed = pack_params(params, batch, spatial, kernel_size)

    out = discriminator_forward(packed, x)
    out = jax.block_until_ready(out)
    assert out.shape == (batch, 1), out.shape
    assert bool(jnp.all(jnp.isfinite(out)))

    # bf16 MXU inputs (per perf review) vs the f32-HIGHEST reference through three
    # conv+BN layers -> 3e-2 tolerance (structural bugs show up as O(0.1+) errors).
    ref = _reference_forward(params, x)
    assert bool(jnp.allclose(out, ref, rtol=3e-2, atol=3e-2)), (out, ref)

    print("KERNEL_OK")
</pallas_src>

<mosaic_0001>
module attributes {stable_mosaic.version = 11 : i64} {
  func.func @_discriminator_kernel(%arg0: memref<8x640xf32, #tpu.memory_space<vmem>>, %arg1: memref<8x72xbf16, #tpu.memory_space<vmem>>, %arg2: memref<8x72xbf16, #tpu.memory_space<vmem>>, %arg3: memref<1x72xbf16, #tpu.memory_space<vmem>>, %arg4: memref<8x8xf32, #tpu.memory_space<vmem>>, %arg5: memref<3x640xf32, #tpu.memory_space<vmem>>, %arg6: memref<640x2xf32, #tpu.memory_space<vmem>>, %arg7: memref<1x2xf32, #tpu.memory_space<vmem>>) attributes {dimension_semantics = [], scalar_prefetch = 0 : i64, scratch_operands = 0 : i64, tpu.core_type = #tpu.core_type<tc>} {
    %c0 = arith.constant 0 : index
    %c0_0 = arith.constant 0 : index
    %0 = vector.load %arg5[%c0, %c0_0] : memref<3x640xf32, #tpu.memory_space<vmem>>, vector<1x640xf32>
    %c1 = arith.constant 1 : index
    %c0_1 = arith.constant 0 : index
    %1 = vector.load %arg5[%c1, %c0_1] : memref<3x640xf32, #tpu.memory_space<vmem>>, vector<1x640xf32>
    %c2 = arith.constant 2 : index
    %c0_2 = arith.constant 0 : index
    %2 = vector.load %arg5[%c2, %c0_2] : memref<3x640xf32, #tpu.memory_space<vmem>>, vector<1x640xf32>
    %c0_3 = arith.constant 0 : index
    %c0_4 = arith.constant 0 : index
    %3 = vector.load %arg4[%c0_3, %c0_4] : memref<8x8xf32, #tpu.memory_space<vmem>>, vector<8x1xf32>
    %c0_5 = arith.constant 0 : index
    %c1_6 = arith.constant 1 : index
    %4 = vector.load %arg4[%c0_5, %c1_6] : memref<8x8xf32, #tpu.memory_space<vmem>>, vector<8x1xf32>
    %c0_7 = arith.constant 0 : index
    %c2_8 = arith.constant 2 : index
    %5 = vector.load %arg4[%c0_7, %c2_8] : memref<8x8xf32, #tpu.memory_space<vmem>>, vector<8x1xf32>
    %c0_9 = arith.constant 0 : index
    %c3 = arith.constant 3 : index
    %6 = vector.load %arg4[%c0_9, %c3] : memref<8x8xf32, #tpu.memory_space<vmem>>, vector<8x1xf32>
    %c0_10 = arith.constant 0 : index
    %c4 = arith.constant 4 : index
    %7 = vector.load %arg4[%c0_10, %c4] : memref<8x8xf32, #tpu.memory_space<vmem>>, vector<1x1xf32>
    %c0_11 = arith.constant 0 : index
    %c5 = arith.constant 5 : index
    %8 = vector.load %arg4[%c0_11, %c5] : memref<8x8xf32, #tpu.memory_space<vmem>>, vector<1x1xf32>
    %c0_12 = arith.constant 0 : index
    %c6 = arith.constant 6 : index
    %9 = vector.load %arg4[%c0_12, %c6] : memref<8x8xf32, #tpu.memory_space<vmem>>, vector<1x1xf32>
    %c0_13 = arith.constant 0 : index
    %c0_14 = arith.constant 0 : index
    %10 = vector.load %arg0[%c0_13, %c0_14] : memref<8x640xf32, #tpu.memory_space<vmem>>, vector<8x640xf32>
    %c0_15 = arith.constant 0 : index
    %c0_16 = arith.constant 0 : index
    %11 = vector.load %arg1[%c0_15, %c0_16] : memref<8x72xbf16, #tpu.memory_space<vmem>>, vector<8x72xbf16>
    %c639_i32 = arith.constant 639 : i32
    %12 = tpu.dynamic_rotate %10 by %c639_i32 dim 1 : vector<8x640xf32>, i32 -> vector<8x640xf32>
    %c638_i32 = arith.constant 638 : i32
    %13 = tpu.dynamic_rotate %10 by %c638_i32 dim 1 : vector<8x640xf32>, i32 -> vector<8x640xf32>
    %c624_i32 = arith.constant 624 : i32
    %14 = tpu.dynamic_rotate %10 by %c624_i32 dim 1 : vector<8x640xf32>, i32 -> vector<8x640xf32>
    %c623_i32 = arith.constant 623 : i32
    %15 = tpu.dynamic_rotate %10 by %c623_i32 dim 1 : vector<8x640xf32>, i32 -> vector<8x640xf32>
    %c622_i32 = arith.constant 622 : i32
    %16 = tpu.dynamic_rotate %10 by %c622_i32 dim 1 : vector<8x640xf32>, i32 -> vector<8x640xf32>
    %c608_i32 = arith.constant 608 : i32
    %17 = tpu.dynamic_rotate %10 by %c608_i32 dim 1 : vector<8x640xf32>, i32 -> vector<8x640xf32>
    %c607_i32 = arith.constant 607 : i32
    %18 = tpu.dynamic_rotate %10 by %c607_i32 dim 1 : vector<8x640xf32>, i32 -> vector<8x640xf32>
    %c606_i32 = arith.constant 606 : i32
    %19 = tpu.dynamic_rotate %10 by %c606_i32 dim 1 : vector<8x640xf32>, i32 -> vector<8x640xf32>
    %20 = tpu.concatenate %10, %12, %13, %14, %15, %16, %17, %18, %19 in 0 : vector<8x640xf32>, vector<8x640xf32>, vector<8x640xf32>, vector<8x640xf32>, vector<8x640xf32>, vector<8x640xf32>, vector<8x640xf32>, vector<8x640xf32>, vector<8x640xf32> -> vector<72x640xf32>
    %21 = arith.truncf %20 : vector<72x640xf32> to vector<72x640xbf16>
    %cst = arith.constant dense<0.000000e+00> : vector<8x640xf32>
    %22 = tpu.matmul %11, %21, %cst {dimension_numbers = #tpu.dot_dimension_numbers<[1], [0], [0], [1], [0, 0, 1, 1], [], []>} : vector<8x72xbf16>, vector<72x640xbf16>, vector<8x640xf32> -> vector<8x640xf32>
    %23 = vector.broadcast %0 : vector<1x640xf32> to vector<8x640xf32>
    %24 = arith.mulf %22, %23 : vector<8x640xf32>
    %cst_17 = arith.constant dense<0.000000e+00> : vector<8xf32>
    %25 = vector.multi_reduction <add>, %24, %cst_17 [1] : vector<8x640xf32> to vector<8xf32>
    %26 = vector.shape_cast %25 : vector<8xf32> to vector<8x1xf32>
    %cst_18 = arith.constant 0.00255102036 : f32
    %27 = vector.broadcast %cst_18 : f32 to vector<8x1xf32>
    %28 = arith.mulf %26, %27 : vector<8x1xf32>
    %29 = arith.mulf %22, %22 : vector<8x640xf32>
    %30 = vector.broadcast %0 : vector<1x640xf32> to vector<8x640xf32>
    %31 = arith.mulf %29, %30 : vector<8x640xf32>
    %cst_19 = arith.constant dense<0.000000e+00> : vector<8xf32>
    %32 = vector.multi_reduction <add>, %31, %cst_19 [1] : vector<8x640xf32> to vector<8xf32>
    %33 = vector.shape_cast %32 : vector<8xf32> to vector<8x1xf32>
    %cst_20 = arith.constant 0.00255102036 : f32
    %34 = vector.broadcast %cst_20 : f32 to vector<8x1xf32>
    %35 = arith.mulf %33, %34 : vector<8x1xf32>
    %36 = arith.mulf %28, %28 : vector<8x1xf32>
    %37 = arith.subf %35, %36 : vector<8x1xf32>
    %38 = vector.broadcast %28 : vector<8x1xf32> to vector<8x640xf32>
    %39 = arith.subf %22, %38 : vector<8x640xf32>
    %cst_21 = arith.constant 9.99999974E-6 : f32
    %40 = vector.broadcast %cst_21 : f32 to vector<8x1xf32>
    %41 = arith.addf %37, %40 : vector<8x1xf32>
    %42 = math.rsqrt %41 : vector<8x1xf32>
    %43 = vector.broadcast %42 : vector<8x1xf32> to vector<8x640xf32>
    %44 = arith.mulf %39, %43 : vector<8x640xf32>
    %45 = vector.broadcast %3 : vector<8x1xf32> to vector<8x640xf32>
    %46 = arith.mulf %44, %45 : vector<8x640xf32>
    %47 = vector.broadcast %4 : vector<8x1xf32> to vector<8x640xf32>
    %48 = arith.addf %46, %47 : vector<8x640xf32>
    %c4_i32 = arith.constant 4 : i32
    %49 = tpu.dynamic_rotate %48 by %c4_i32 dim 0 : vector<8x640xf32>, i32 -> vector<8x640xf32>
    %50 = tpu.iota {dimensions = array<i32: 0>} : vector<8x640xi32>
    %c4_i32_22 = arith.constant 4 : i32
    %51 = vector.broadcast %c4_i32_22 : i32 to vector<8x640xi32>
    %52 = arith.cmpi slt, %50, %51 : vector<8x640xi32>
    %53 = arith.minimumf %48, %49 : vector<8x640xf32>
    %54 = arith.maximumf %48, %49 : vector<8x640xf32>
    %55 = arith.select %52, %53, %54 : vector<8x640xi1>, vector<8x640xf32>
    %c0_23 = arith.constant 0 : index
    %c0_24 = arith.constant 0 : index
    %56 = vector.load %arg2[%c0_23, %c0_24] : memref<8x72xbf16, #tpu.memory_space<vmem>>, vector<8x72xbf16>
    %c639_i32_25 = arith.constant 639 : i32
    %57 = tpu.dynamic_rotate %55 by %c639_i32_25 dim 1 : vector<8x640xf32>, i32 -> vector<8x640xf32>
    %c638_i32_26 = arith.constant 638 : i32
    %58 = tpu.dynamic_rotate %55 by %c638_i32_26 dim 1 : vector<8x640xf32>, i32 -> vector<8x640xf32>
    %c624_i32_27 = arith.constant 624 : i32
    %59 = tpu.dynamic_rotate %55 by %c624_i32_27 dim 1 : vector<8x640xf32>, i32 -> vector<8x640xf32>
    %c623_i32_28 = arith.constant 623 : i32
    %60 = tpu.dynamic_rotate %55 by %c623_i32_28 dim 1 : vector<8x640xf32>, i32 -> vector<8x640xf32>
    %c622_i32_29 = arith.constant 622 : i32
    %61 = tpu.dynamic_rotate %55 by %c622_i32_29 dim 1 : vector<8x640xf32>, i32 -> vector<8x640xf32>
    %c608_i32_30 = arith.constant 608 : i32
    %62 = tpu.dynamic_rotate %55 by %c608_i32_30 dim 1 : vector<8x640xf32>, i32 -> vector<8x640xf32>
    %c607_i32_31 = arith.constant 607 : i32
    %63 = tpu.dynamic_rotate %55 by %c607_i32_31 dim 1 : vector<8x640xf32>, i32 -> vector<8x640xf32>
    %c606_i32_32 = arith.constant 606 : i32
    %64 = tpu.dynamic_rotate %55 by %c606_i32_32 dim 1 : vector<8x640xf32>, i32 -> vector<8x640xf32>
    %65 = tpu.concatenate %55, %57, %58, %59, %60, %61, %62, %63, %64 in 0 : vector<8x640xf32>, vector<8x640xf32>, vector<8x640xf32>, vector<8x640xf32>, vector<8x640xf32>, vector<8x640xf32>, vector<8x640xf32>, vector<8x640xf32>, vector<8x640xf32> -> vector<72x640xf32>
    %66 = arith.truncf %65 : vector<72x640xf32> to vector<72x640xbf16>
    %cst_33 = arith.constant dense<0.000000e+00> : vector<8x640xf32>
    %67 = tpu.matmul %56, %66, %cst_33 {dimension_numbers = #tpu.dot_dimension_numbers<[1], [0], [0], [1], [0, 0, 1, 1], [], []>} : vector<8x72xbf16>, vector<72x640xbf16>, vector<8x640xf32> -> vector<8x640xf32>
    %68 = vector.broadcast %1 : vector<1x640xf32> to vector<8x640xf32>
    %69 = arith.mulf %67, %68 : vector<8x640xf32>
    %cst_34 = arith.constant dense<0.000000e+00> : vector<8xf32>
    %70 = vector.multi_reduction <add>, %69, %cst_34 [1] : vector<8x640xf32> to vector<8xf32>
    %71 = vector.shape_cast %70 : vector<8xf32> to vector<8x1xf32>
    %cst_35 = arith.constant 0.00347222225 : f32
    %72 = vector.broadcast %cst_35 : f32 to vector<8x1xf32>
    %73 = arith.mulf %71, %72 : vector<8x1xf32>
    %74 = arith.mulf %67, %67 : vector<8x640xf32>
    %75 = vector.broadcast %1 : vector<1x640xf32> to vector<8x640xf32>
    %76 = arith.mulf %74, %75 : vector<8x640xf32>
    %cst_36 = arith.constant dense<0.000000e+00> : vector<8xf32>
    %77 = vector.multi_reduction <add>, %76, %cst_36 [1] : vector<8x640xf32> to vector<8xf32>
    %78 = vector.shape_cast %77 : vector<8xf32> to vector<8x1xf32>
    %cst_37 = arith.constant 0.00347222225 : f32
    %79 = vector.broadcast %cst_37 : f32 to vector<8x1xf32>
    %80 = arith.mulf %78, %79 : vector<8x1xf32>
    %81 = arith.mulf %73, %73 : vector<8x1xf32>
    %82 = arith.subf %80, %81 : vector<8x1xf32>
    %83 = vector.broadcast %73 : vector<8x1xf32> to vector<8x640xf32>
    %84 = arith.subf %67, %83 : vector<8x640xf32>
    %cst_38 = arith.constant 9.99999974E-6 : f32
    %85 = vector.broadcast %cst_38 : f32 to vector<8x1xf32>
    %86 = arith.addf %82, %85 : vector<8x1xf32>
    %87 = math.rsqrt %86 : vector<8x1xf32>
    %88 = vector.broadcast %87 : vector<8x1xf32> to vector<8x640xf32>
    %89 = arith.mulf %84, %88 : vector<8x640xf32>
    %90 = vector.broadcast %5 : vector<8x1xf32> to vector<8x640xf32>
    %91 = arith.mulf %89, %90 : vector<8x640xf32>
    %92 = vector.broadcast %6 : vector<8x1xf32> to vector<8x640xf32>
    %93 = arith.addf %91, %92 : vector<8x640xf32>
    %c4_i32_39 = arith.constant 4 : i32
    %94 = tpu.dynamic_rotate %93 by %c4_i32_39 dim 0 : vector<8x640xf32>, i32 -> vector<8x640xf32>
    %95 = tpu.iota {dimensions = array<i32: 0>} : vector<8x640xi32>
    %c4_i32_40 = arith.constant 4 : i32
    %96 = vector.broadcast %c4_i32_40 : i32 to vector<8x640xi32>
    %97 = arith.cmpi slt, %95, %96 : vector<8x640xi32>
    %98 = arith.minimumf %93, %94 : vector<8x640xf32>
    %99 = arith.maximumf %93, %94 : vector<8x640xf32>
    %100 = arith.select %97, %98, %99 : vector<8x640xi1>, vector<8x640xf32>
    %c0_41 = arith.constant 0 : index
    %c0_42 = arith.constant 0 : index
    %101 = vector.load %arg3[%c0_41, %c0_42] : memref<1x72xbf16, #tpu.memory_space<vmem>>, vector<1x72xbf16>
    %c639_i32_43 = arith.constant 639 : i32
    %102 = tpu.dynamic_rotate %100 by %c639_i32_43 dim 1 : vector<8x640xf32>, i32 -> vector<8x640xf32>
    %c638_i32_44 = arith.constant 638 : i32
    %103 = tpu.dynamic_rotate %100 by %c638_i32_44 dim 1 : vector<8x640xf32>, i32 -> vector<8x640xf32>
    %c624_i32_45 = arith.constant 624 : i32
    %104 = tpu.dynamic_rotate %100 by %c624_i32_45 dim 1 : vector<8x640xf32>, i32 -> vector<8x640xf32>
    %c623_i32_46 = arith.constant 623 : i32
    %105 = tpu.dynamic_rotate %100 by %c623_i32_46 dim 1 : vector<8x640xf32>, i32 -> vector<8x640xf32>
    %c622_i32_47 = arith.constant 622 : i32
    %106 = tpu.dynamic_rotate %100 by %c622_i32_47 dim 1 : vector<8x640xf32>, i32 -> vector<8x640xf32>
    %c608_i32_48 = arith.constant 608 : i32
    %107 = tpu.dynamic_rotate %100 by %c608_i32_48 dim 1 : vector<8x640xf32>, i32 -> vector<8x640xf32>
    %c607_i32_49 = arith.constant 607 : i32
    %108 = tpu.dynamic_rotate %100 by %c607_i32_49 dim 1 : vector<8x640xf32>, i32 -> vector<8x640xf32>
    %c606_i32_50 = arith.constant 606 : i32
    %109 = tpu.dynamic_rotate %100 by %c606_i32_50 dim 1 : vector<8x640xf32>, i32 -> vector<8x640xf32>
    %110 = tpu.concatenate %100, %102, %103, %104, %105, %106, %107, %108, %109 in 0 : vector<8x640xf32>, vector<8x640xf32>, vector<8x640xf32>, vector<8x640xf32>, vector<8x640xf32>, vector<8x640xf32>, vector<8x640xf32>, vector<8x640xf32>, vector<8x640xf32> -> vector<72x640xf32>
    %111 = arith.truncf %110 : vector<72x640xf32> to vector<72x640xbf16>
    %cst_51 = arith.constant dense<0.000000e+00> : vector<1x640xf32>
    %112 = tpu.matmul %101, %111, %cst_51 {dimension_numbers = #tpu.dot_dimension_numbers<[1], [0], [0], [1], [0, 0, 1, 1], [], []>} : vector<1x72xbf16>, vector<72x640xbf16>, vector<1x640xf32> -> vector<1x640xf32>
    %113 = arith.mulf %112, %2 : vector<1x640xf32>
    %cst_52 = arith.constant dense<0.000000e+00> : vector<1xf32>
    %114 = vector.multi_reduction <add>, %113, %cst_52 [1] : vector<1x640xf32> to vector<1xf32>
    %115 = vector.shape_cast %114 : vector<1xf32> to vector<1x1xf32>
    %cst_53 = arith.constant 5.000000e-03 : f32
    %116 = vector.broadcast %cst_53 : f32 to vector<1x1xf32>
    %117 = arith.mulf %115, %116 : vector<1x1xf32>
    %118 = arith.mulf %112, %112 : vector<1x640xf32>
    %119 = arith.mulf %118, %2 : vector<1x640xf32>
    %cst_54 = arith.constant dense<0.000000e+00> : vector<1xf32>
    %120 = vector.multi_reduction <add>, %119, %cst_54 [1] : vector<1x640xf32> to vector<1xf32>
    %121 = vector.shape_cast %120 : vector<1xf32> to vector<1x1xf32>
    %cst_55 = arith.constant 5.000000e-03 : f32
    %122 = vector.broadcast %cst_55 : f32 to vector<1x1xf32>
    %123 = arith.mulf %121, %122 : vector<1x1xf32>
    %124 = arith.mulf %117, %117 : vector<1x1xf32>
    %125 = arith.subf %123, %124 : vector<1x1xf32>
    %126 = vector.broadcast %117 : vector<1x1xf32> to vector<1x640xf32>
    %127 = arith.subf %112, %126 : vector<1x640xf32>
    %cst_56 = arith.constant 9.99999974E-6 : f32
    %128 = vector.broadcast %cst_56 : f32 to vector<1x1xf32>
    %129 = arith.addf %125, %128 : vector<1x1xf32>
    %130 = math.rsqrt %129 : vector<1x1xf32>
    %131 = vector.broadcast %130 : vector<1x1xf32> to vector<1x640xf32>
    %132 = arith.mulf %127, %131 : vector<1x640xf32>
    %133 = vector.broadcast %7 : vector<1x1xf32> to vector<1x640xf32>
    %134 = arith.mulf %132, %133 : vector<1x640xf32>
    %135 = vector.broadcast %8 : vector<1x1xf32> to vector<1x640xf32>
    %136 = arith.addf %134, %135 : vector<1x640xf32>
    %c0_57 = arith.constant 0 : index
    %c0_58 = arith.constant 0 : index
    %137 = vector.load %arg6[%c0_57, %c0_58] : memref<640x2xf32, #tpu.memory_space<vmem>>, vector<640x2xf32>
    %cst_59 = arith.constant dense<0.000000e+00> : vector<1x2xf32>
    %138 = tpu.matmul %136, %137, %cst_59 {dimension_numbers = #tpu.dot_dimension_numbers<[1], [0], [0], [1], [0, 0, 1, 1], [], []>} : vector<1x640xf32>, vector<640x2xf32>, vector<1x2xf32> -> vector<1x2xf32>
    %139 = vector.broadcast %9 : vector<1x1xf32> to vector<1x2xf32>
    %140 = arith.addf %138, %139 : vector<1x2xf32>
    %c0_60 = arith.constant 0 : index
    %c0_61 = arith.constant 0 : index
    %141 = vector.load %arg7[%c0_60, %c0_61] : memref<1x2xf32, #tpu.memory_space<vmem>>, vector<1x2xf32>
    tpu.vector_store %arg7[%c0_60, %c0_61], %140 {strides = array<i32>} : memref<1x2xf32, #tpu.memory_space<vmem>>, vector<1x2xf32>,
    return
  }
}

</mosaic_0001>

<llo_original>
// kernel: tpu_custom_call.1
$region0: #{tpu_custom_call.1}
  #allocation0 [shape = 'u32[]', space=smem, size = 0x4, offset = 0x4, fixed_abs, tag = 'smem constant byte address 0x4 - core index']
  #allocation1 [shape = 'u32[144,128]{1,0:T(1,128)}', space=vmem, size = 0x12000, scoped, tag = 'internal scratch']
  %s0 = inlined_call_operand.vmem [shape: f32[8,640], index: 0, kind: input, shape index: {}]
  %s1 = inlined_call_operand.vmem [shape: bf16[8,72], index: 1, kind: input, shape index: {}]
  %s2 = inlined_call_operand.vmem [shape: bf16[8,72], index: 2, kind: input, shape index: {}]
  %s3 = inlined_call_operand.vmem [shape: bf16[1,72], index: 3, kind: input, shape index: {}]
  %s4 = inlined_call_operand.vmem [shape: f32[8,8], index: 4, kind: input, shape index: {}]
  %s5 = inlined_call_operand.vmem [shape: f32[3,640], index: 5, kind: input, shape index: {}]
  %s6 = inlined_call_operand.vmem [shape: f32[640,2], index: 6, kind: input, shape index: {}]
  %s7 = inlined_call_operand.hbm [shape: f32[1,2], index: 7, kind: output, shape index: {}]
  %s8 = sld [smem:[#allocation0]]
  $region38: #{tpu_custom_call.1} parent=0
    _
  %s10 = ssub.s32 1, %s8
  %s11 = scalar_select 0, %s10, %s8
  $region1: #{tpu_custom_call.1} parent=0
    #allocation2 [shape = 'u8[512]{0}', space=vmem, size = 0x400, scoped, tag = 'output window, operand 0, single buffered']
    #allocation3 [shape = 's32[1]{0}', space=sflag, size = 0x4, scoped, tag = 'scoped memory for tpu_custom_call.1']
    %12 = vsyncpa [#allocation3], 0
    // Predicated region
    $region2: #{tpu_custom_call.1} parent=1 // pred_check
      _
    $region3: #{tpu_custom_call.1} parent=1 // pred_check_branch
      %14 = sbr.rel (0) target = $region5
    $region4: #{tpu_custom_call.1} parent=1 // pred_region
      _
    $region5: #{tpu_custom_call.1} parent=1 // pred_fallthru
      _
    // Predicated region
    $region6: #{tpu_custom_call.1} parent=1 // pred_check
      _
    $region7: #{tpu_custom_call.1} parent=1 // pred_check_branch
      %16 = sbr.rel (0) target = $region9
    $region8: #{tpu_custom_call.1} parent=1 // pred_region
      _
    $region9: #{tpu_custom_call.1} parent=1 // pred_fallthru
      _
    // Predicated region
    $region10: #{tpu_custom_call.1} parent=1 // pred_check
      _
    $region11: #{tpu_custom_call.1} parent=1 // pred_check_branch
      %18 = sbr.rel (0) target = $region13
    $region12: #{tpu_custom_call.1} parent=1 // pred_region
      _
    $region13: #{tpu_custom_call.1} parent=1 // pred_fallthru
      _
    // Predicated region
    $region14: #{tpu_custom_call.1} parent=1 // pred_check
      _
    $region15: #{tpu_custom_call.1} parent=1 // pred_check_branch
      %20 = sbr.rel (0) target = $region17
    $region16: #{tpu_custom_call.1} parent=1 // pred_region
      _
    $region17: #{tpu_custom_call.1} parent=1 // pred_fallthru
      _
    // Predicated region
    $region18: #{tpu_custom_call.1} parent=1 // pred_check
      _
    $region19: #{tpu_custom_call.1} parent=1 // pred_check_branch
      %22 = sbr.rel (0) target = $region21
    $region20: #{tpu_custom_call.1} parent=1 // pred_region
      _
    $region21: #{tpu_custom_call.1} parent=1 // pred_fallthru
      _
    // Predicated region
    $region22: #{tpu_custom_call.1} parent=1 // pred_check
      _
    $region23: #{tpu_custom_call.1} parent=1 // pred_check_branch
      %24 = sbr.rel (0) target = $region25
    $region24: #{tpu_custom_call.1} parent=1 // pred_region
      _
    $region25: #{tpu_custom_call.1} parent=1 // pred_fallthru
      _
    // Predicated region
    $region26: #{tpu_custom_call.1} parent=1 // pred_check
      _
    $region27: #{tpu_custom_call.1} parent=1 // pred_check_branch
      %26 = sbr.rel (0) target = $region29
    $region28: #{tpu_custom_call.1} parent=1 // pred_region
      _
    $region29: #{tpu_custom_call.1} parent=1 // pred_fallthru
      _
    %v28 = vld [vmem:[%s5] ss:$4 sm:$0x1f]
    %s29 = scalar_lea.vmem %s5, 1
    %v30 = vld [vmem:[%s29] ss:$4 sm:$0x1f]
    %s31 = scalar_lea.vmem %s5, 2
    %v32 = vld [vmem:[%s31] ss:$4 sm:$0x1f]
    %v33 = vld [vmem:[%s4] sm:$0xff]
    %v34 = vld [vmem:[%s4] sm:$0x1]
    %v35 = vld [vmem:[%s0] sm:$0xff]
    %v36 = vld [vmem:[%s0 + $0x8] sm:$0xff]
    %v37 = vld [vmem:[%s0 + $0x10] sm:$0xff]
    %v38 = vld [vmem:[%s0 + $0x18] sm:$0xff]
    %v39 = vld [vmem:[%s0 + $0x20] sm:$0xff]
    %v40 = vld [vmem:[%s1] sm:$0xf]
    %41 = vrot.lane.b32.xlu0 %v35, 127
    %v42 = vpop.permute.xlu0 %41
    %43 = vrot.lane.b32.xlu0 %v36, 127
    %v44 = vpop.permute.xlu0 %43
    %45 = vrot.lane.b32.xlu0 %v37, 127
    %v46 = vpop.permute.xlu0 %45
    %47 = vrot.lane.b32.xlu0 %v38, 127
    %v48 = vpop.permute.xlu0 %47
    %49 = vrot.lane.b32.xlu0 %v39, 127
    %v50 = vpop.permute.xlu0 %49
    %v51 = vlaneseq
    %v52 = vand.u32 %v51, 127
    %vm53 = vcmp.lt.s32.totalorder %v52, 127
    %v54 = vsel %vm53, %v48, %v50
    %v55 = vsel %vm53, %v46, %v48
    %v56 = vsel %vm53, %v44, %v46
    %v57 = vsel %vm53, %v42, %v44
    %v58 = vsel %vm53, %v50, %v42
    %59 = vrot.lane.b32.xlu0 %v35, 126
    %v60 = vpop.permute.xlu0 %59
    %61 = vrot.lane.b32.xlu0 %v36, 126
    %v62 = vpop.permute.xlu0 %61
    %63 = vrot.lane.b32.xlu0 %v37, 126
    %v64 = vpop.permute.xlu0 %63
    %65 = vrot.lane.b32.xlu0 %v38, 126
    %v66 = vpop.permute.xlu0 %65
    %67 = vrot.lane.b32.xlu0 %v39, 126
    %v68 = vpop.permute.xlu0 %67
    %vm69 = vcmp.lt.s32.totalorder %v52, 126
    %v70 = vsel %vm69, %v66, %v68
    %v71 = vsel %vm69, %v64, %v66
    %v72 = vsel %vm69, %v62, %v64
    %v73 = vsel %vm69, %v60, %v62
    %v74 = vsel %vm69, %v68, %v60
    %75 = vrot.lane.b32.xlu0 %v35, 112
    %v76 = vpop.permute.xlu0 %75
    %77 = vrot.lane.b32.xlu0 %v36, 112
    %v78 = vpop.permute.xlu0 %77
    %79 = vrot.lane.b32.xlu0 %v37, 112
    %v80 = vpop.permute.xlu0 %79
    %81 = vrot.lane.b32.xlu0 %v38, 112
    %v82 = vpop.permute.xlu0 %81
    %83 = vrot.lane.b32.xlu0 %v39, 112
    %v84 = vpop.permute.xlu0 %83
    %vm85 = vcmp.lt.s32.totalorder %v52, 112
    %v86 = vsel %vm85, %v82, %v84
    %v87 = vsel %vm85, %v80, %v82
    %v88 = vsel %vm85, %v78, %v80
    %v89 = vsel %vm85, %v76, %v78
    %v90 = vsel %vm85, %v84, %v76
    %91 = vrot.lane.b32.xlu0 %v35, 111
    %v92 = vpop.permute.xlu0 %91
    %93 = vrot.lane.b32.xlu0 %v36, 111
    %v94 = vpop.permute.xlu0 %93
    %95 = vrot.lane.b32.xlu0 %v37, 111
    %v96 = vpop.permute.xlu0 %95
    %97 = vrot.lane.b32.xlu0 %v38, 111
    %v98 = vpop.permute.xlu0 %97
    %99 = vrot.lane.b32.xlu0 %v39, 111
    %v100 = vpop.permute.xlu0 %99
    %vm101 = vcmp.lt.s32.totalorder %v52, 111
    %v102 = vsel %vm101, %v98, %v100
    %v103 = vsel %vm101, %v96, %v98
    %v104 = vsel %vm101, %v94, %v96
    %v105 = vsel %vm101, %v92, %v94
    %v106 = vsel %vm101, %v100, %v92
    %107 = vrot.lane.b32.xlu0 %v35, 110
    %v108 = vpop.permute.xlu0 %107
    %109 = vrot.lane.b32.xlu0 %v36, 110
    %v110 = vpop.permute.xlu0 %109
    %111 = vrot.lane.b32.xlu0 %v37, 110
    %v112 = vpop.permute.xlu0 %111
    %113 = vrot.lane.b32.xlu0 %v38, 110
    %v114 = vpop.permute.xlu0 %113
    %115 = vrot.lane.b32.xlu0 %v39, 110
    %v116 = vpop.permute.xlu0 %115
    %vm117 = vcmp.lt.s32.totalorder %v52, 110
    %v118 = vsel %vm117, %v114, %v116
    %v119 = vsel %vm117, %v112, %v114
    %v120 = vsel %vm117, %v110, %v112
    %v121 = vsel %vm117, %v108, %v110
    %v122 = vsel %vm117, %v116, %v108
    %123 = vrot.lane.b32.xlu0 %v35, 96
    %v124 = vpop.permute.xlu0 %123
    %125 = vrot.lane.b32.xlu0 %v36, 96
    %v126 = vpop.permute.xlu0 %125
    %127 = vrot.lane.b32.xlu0 %v37, 96
    %v128 = vpop.permute.xlu0 %127
    %129 = vrot.lane.b32.xlu0 %v38, 96
    %v130 = vpop.permute.xlu0 %129
    %131 = vrot.lane.b32.xlu0 %v39, 96
    %v132 = vpop.permute.xlu0 %131
    %vm133 = vcmp.lt.s32.totalorder %v52, 96
    %v134 = vsel %vm133, %v130, %v132
    %v135 = vsel %vm133, %v128, %v130
    %v136 = vsel %vm133, %v126, %v128
    %v137 = vsel %vm133, %v124, %v126
    %v138 = vsel %vm133, %v132, %v124
    %139 = vrot.lane.b32.xlu0 %v35, 95
    %v140 = vpop.permute.xlu0 %139
    %141 = vrot.lane.b32.xlu0 %v36, 95
    %v142 = vpop.permute.xlu0 %141
    %143 = vrot.lane.b32.xlu0 %v37, 95
    %v144 = vpop.permute.xlu0 %143
    %145 = vrot.lane.b32.xlu0 %v38, 95
    %v146 = vpop.permute.xlu0 %145
    %147 = vrot.lane.b32.xlu0 %v39, 95
    %v148 = vpop.permute.xlu0 %147
    %vm149 = vcmp.lt.s32.totalorder %v52, 95
    %v150 = vsel %vm149, %v146, %v148
    %v151 = vsel %vm149, %v144, %v146
    %v152 = vsel %vm149, %v142, %v144
    %v153 = vsel %vm149, %v140, %v142
    %v154 = vsel %vm149, %v148, %v140
    %155 = vrot.lane.b32.xlu0 %v35, 94
    %v156 = vpop.permute.xlu0 %155
    %157 = vrot.lane.b32.xlu0 %v36, 94
    %v158 = vpop.permute.xlu0 %157
    %159 = vrot.lane.b32.xlu0 %v37, 94
    %v160 = vpop.permute.xlu0 %159
    %161 = vrot.lane.b32.xlu0 %v38, 94
    %v162 = vpop.permute.xlu0 %161
    %163 = vrot.lane.b32.xlu0 %v39, 94
    %v164 = vpop.permute.xlu0 %163
    %vm165 = vcmp.lt.s32.totalorder %v52, 94
    %v166 = vsel %vm165, %v162, %v164
    %v167 = vsel %vm165, %v160, %v162
    %v168 = vsel %vm165, %v158, %v160
    %v169 = vsel %vm165, %v156, %v158
    %v170 = vsel %vm165, %v164, %v156
    %v171 = vpack.c.bf16 %v57, %v35
    %v172 = vpack.c.bf16 %v56, %v36
    %v173 = vpack.c.bf16 %v55, %v37
    %v174 = vpack.c.bf16 %v54, %v38
    %v175 = vpack.c.bf16 %v58, %v39
    %v176 = vpack.c.bf16 %v89, %v73
    %v177 = vpack.c.bf16 %v88, %v72
    %v178 = vpack.c.bf16 %v87, %v71
    %v179 = vpack.c.bf16 %v86, %v70
    %v180 = vpack.c.bf16 %v90, %v74
    %v181 = vpack.c.bf16 %v121, %v105
    %v182 = vpack.c.bf16 %v120, %v104
    %v183 = vpack.c.bf16 %v119, %v103
    %v184 = vpack.c.bf16 %v118, %v102
    %v185 = vpack.c.bf16 %v122, %v106
    %v186 = vpack.c.bf16 %v153, %v137
    %v187 = vpack.c.bf16 %v152, %v136
    %v188 = vpack.c.bf16 %v151, %v135
    %v189 = vpack.c.bf16 %v150, %v134
    %v190 = vpack.c.bf16 %v154, %v138
    %v191 = vpack.c.bf16 %v169, %v169
    %v192 = vpack.c.bf16 %v168, %v168
    %v193 = vpack.c.bf16 %v167, %v167
    %v194 = vpack.c.bf16 %v166, %v166
    %v195 = vpack.c.bf16 %v170, %v170
    %vm196 = vcmask 588800
    %v198 = vsel %vm196, %v40, 0
    %vm200 = vcmask 1043456
    %v202 = vsel %vm200, %v191, 0
    %v205 = vsel %vm200, %v192, 0
    %v208 = vsel %vm200, %v193, 0
    %v211 = vsel %vm200, %v194, 0
    %v214 = vsel %vm200, %v195, 0
    %216 = vmatprep.subr.bf16.mxu0 %v172
    %217 = vmatpush1.bf16.msra.mxu0 %v171
    %218 = vmatprep.subr.bf16.mxu0 %v177
    %219 = vmatpush1.bf16.msra.mxu0 %v176
    %220 = vmatprep.subr.bf16.mxu0 %v182
    %221 = vmatpush1.bf16.msra.mxu0 %v181
    %222 = vmatprep.subr.bf16.mxu0 %v187
    %223 = vmatpush1.bf16.msra.mxu0 %v186
    %224 = vmatprep.subr.bf16.mxu0 %v205
    %225 = vmatpush1.bf16.msra.mxu0 %v202
    %226 = vmatprep.subr.bf16.mxu0 0
    %227 = vmatpush1.bf16.msra.mxu0 0
    %228 = vmatprep.subr.bf16.mxu0 0
    %229 = vmatpush1.bf16.msra.mxu0 0
    %230 = vmatprep.subr.bf16.mxu0 0
    %231 = vmatpush1.bf16.msra.mxu0 0
    %232 = vmatprep.subr.bf16.mxu0 0
    %233 = vmatpush1.bf16.msra.mxu0 0
    %234 = vmatprep.subr.bf16.mxu0 0
    %235 = vmatpush1.bf16.msra.mxu0 0
    %236 = vmatprep.subr.bf16.mxu0 0
    %237 = vmatpush1.bf16.msra.mxu0 0
    %238 = vmatprep.subr.bf16.mxu0 0
    %239 = vmatpush1.bf16.msra.mxu0 0
    %240 = vmatprep.subr.bf16.mxu0 0
    %241 = vmatpush1.bf16.msra.mxu0 0
    %242 = vmatprep.subr.bf16.mxu0 0
    %243 = vmatpush1.bf16.msra.mxu0 0
    %244 = vmatprep.subr.bf16.mxu0 0
    %245 = vmatpush1.bf16.msra.mxu0 0
    %246 = vmatprep.subr.bf16.mxu0 0
    %247 = vmatpush1.bf16.msra.mxu0 0
    %248 = vmatprep.mubr.bf16.mxu0 0
    %249 = vmatmul.mubr.bf16.gmra.mrb[0].mxu0 %v198
    %v250 = vpop.f32.mrb[0].mxu0
    %v251 = vadd.f32 0.0, %v250
    %v252 = vpop.f32.mrb[0].mxu0
    %v253 = vadd.f32 0.0, %v252
    %v254 = vpop.f32.mrb[0].mxu0
    %v255 = vpop.f32.mrb[0].mxu0
    %256 = vdwg.mxu0
    %257 = vmatprep.subr.bf16.mxu0 %v174
    %258 = vmatpush1.bf16.msra.mxu0 %v173
    %259 = vmatprep.subr.bf16.mxu0 %v179
    %260 = vmatpush1.bf16.msra.mxu0 %v178
    %261 = vmatprep.subr.bf16.mxu0 %v184
    %262 = vmatpush1.bf16.msra.mxu0 %v183
    %263 = vmatprep.subr.bf16.mxu0 %v189
    %264 = vmatpush1.bf16.msra.mxu0 %v188
    %265 = vmatprep.subr.bf16.mxu0 %v211
    %266 = vmatpush1.bf16.msra.mxu0 %v208
    %267 = vmatprep.subr.bf16.mxu0 0
    %268 = vmatpush1.bf16.msra.mxu0 0
    %269 = vmatprep.subr.bf16.mxu0 0
    %270 = vmatpush1.bf16.msra.mxu0 0
    %271 = vmatprep.subr.bf16.mxu0 0
    %272 = vmatpush1.bf16.msra.mxu0 0
    %273 = vmatprep.subr.bf16.mxu0 0
    %274 = vmatpush1.bf16.msra.mxu0 0
    %275 = vmatprep.subr.bf16.mxu0 0
    %276 = vmatpush1.bf16.msra.mxu0 0
    %277 = vmatprep.subr.bf16.mxu0 0
    %278 = vmatpush1.bf16.msra.mxu0 0
    %279 = vmatprep.subr.bf16.mxu0 0
    %280 = vmatpush1.bf16.msra.mxu0 0
    %281 = vmatprep.subr.bf16.mxu0 0
    %282 = vmatpush1.bf16.msra.mxu0 0
    %283 = vmatprep.subr.bf16.mxu0 0
    %284 = vmatpush1.bf16.msra.mxu0 0
    %285 = vmatprep.subr.bf16.mxu0 0
    %286 = vmatpush1.bf16.msra.mxu0 0
    %287 = vmatprep.subr.bf16.mxu0 0
    %288 = vmatpush1.bf16.msra.mxu0 0
    %289 = vmatprep.mubr.bf16.mxu0 0
    %290 = vmatmul.mubr.bf16.gmra.mrb[0].mxu0 %v198
    %v291 = vpop.f32.mrb[0].mxu0
    %v292 = vadd.f32 0.0, %v291
    %v293 = vpop.f32.mrb[0].mxu0
    %v294 = vadd.f32 0.0, %v293
    %v295 = vpop.f32.mrb[0].mxu0
    %v296 = vpop.f32.mrb[0].mxu0
    %297 = vdwg.mxu0
    %298 = vmatprep.subr.bf16.mxu0 0
    %299 = vmatpush1.bf16.msra.mxu0 %v175
    %300 = vmatprep.subr.bf16.mxu0 0
    %301 = vmatpush1.bf16.msra.mxu0 %v180
    %302 = vmatprep.subr.bf16.mxu0 0
    %303 = vmatpush1.bf16.msra.mxu0 %v185
    %304 = vmatprep.subr.bf16.mxu0 0
    %305 = vmatpush1.bf16.msra.mxu0 %v190
    %306 = vmatprep.subr.bf16.mxu0 0
    %307 = vmatpush1.bf16.msra.mxu0 %v214
    %308 = vmatprep.subr.bf16.mxu0 0
    %309 = vmatpush1.bf16.msra.mxu0 0
    %310 = vmatprep.subr.bf16.mxu0 0
    %311 = vmatpush1.bf16.msra.mxu0 0
    %312 = vmatprep.subr.bf16.mxu0 0
    %313 = vmatpush1.bf16.msra.mxu0 0
    %314 = vmatprep.subr.bf16.mxu0 0
    %315 = vmatpush1.bf16.msra.mxu0 0
    %316 = vmatprep.subr.bf16.mxu0 0
    %317 = vmatpush1.bf16.msra.mxu0 0
    %318 = vmatprep.subr.bf16.mxu0 0
    %319 = vmatpush1.bf16.msra.mxu0 0
    %320 = vmatprep.subr.bf16.mxu0 0
    %321 = vmatpush1.bf16.msra.mxu0 0
    %322 = vmatprep.subr.bf16.mxu0 0
    %323 = vmatpush1.bf16.msra.mxu0 0
    %324 = vmatprep.subr.bf16.mxu0 0
    %325 = vmatpush1.bf16.msra.mxu0 0
    %326 = vmatprep.subr.bf16.mxu0 0
    %327 = vmatpush1.bf16.msra.mxu0 0
    %328 = vmatprep.subr.bf16.mxu0 0
    %329 = vmatpush1.bf16.msra.mxu0 0
    %330 = vmatprep.mubr.bf16.mxu0 0
    %331 = vmatmul.mubr.bf16.gmra.mrb[0].mxu0 %v198
    %v332 = vpop.f32.mrb[0].mxu0
    %v333 = vadd.f32 0.0, %v332
    %v334 = vpop.f32.mrb[0].mxu0
    %v335 = vpop.f32.mrb[0].mxu0
    %v336 = vpop.f32.mrb[0].mxu0
    %337 = vdwg.mxu0
    %v339 = vlaneseq
    %v340 = vshrl.u32 %v339, 7
    %v341 = vsub.s32 0, %v340
    %v342 = vrot.slane %v28, %v341
    %v343 = vlaneseq
    %v344 = vshrl.u32 %v343, 7
    %v345 = vsub.s32 1, %v344
    %v346 = vrot.slane %v28, %v345
    %v347 = vlaneseq
    %v348 = vshrl.u32 %v347, 7
    %v349 = vsub.s32 2, %v348
    %v350 = vrot.slane %v28, %v349
    %v351 = vlaneseq
    %v352 = vshrl.u32 %v351, 7
    %v353 = vsub.s32 3, %v352
    %v354 = vrot.slane %v28, %v353
    %v355 = vlaneseq
    %v356 = vshrl.u32 %v355, 7
    %v357 = vsub.s32 4, %v356
    %v358 = vrot.slane %v28, %v357
    %v364 = vmul.f32 %v251, %v342
    %v365 = vmul.f32 %v253, %v346
    %v366 = vmul.f32 %v292, %v350
    %v367 = vmul.f32 %v294, %v354
    %v368 = vmul.f32 %v333, %v358
    %v369 = vadd.f32 %v364, %v365
    %v370 = vadd.f32 %v369, %v366
    %v371 = vadd.f32 %v370, %v367
    %v372 = vadd.f32 %v371, %v368
    %373 = vadd.xlane.f32.xlu0 %v372
    %v374 = vpop.xlane.xlu0 %373
    %v375 = vmul.f32 %v374, 0.0025510204
    %v376 = vmul.f32 %v251, %v251
    %v377 = vmul.f32 %v253, %v253
    %v378 = vmul.f32 %v292, %v292
    %v379 = vmul.f32 %v294, %v294
    %v380 = vmul.f32 %v333, %v333
    %v381 = vmul.f32 %v376, %v342
    %v382 = vmul.f32 %v377, %v346
    %v383 = vmul.f32 %v378, %v350
    %v384 = vmul.f32 %v379, %v354
    %v385 = vmul.f32 %v380, %v358
    %v386 = vadd.f32 %v381, %v382
    %v387 = vadd.f32 %v386, %v383
    %v388 = vadd.f32 %v387, %v384
    %v389 = vadd.f32 %v388, %v385
    %390 = vadd.xlane.f32.xlu0 %v389
    %v391 = vpop.xlane.xlu0 %390
    %v392 = vmul.f32 %v391, 0.0025510204
    %v393 = vmul.f32 %v375, %v375
    %v394 = vsub.f32 %v392, %v393
    %v395 = vsub.f32 %v251, %v375
    %v396 = vsub.f32 %v253, %v375
    %v397 = vsub.f32 %v292, %v375
    %v398 = vsub.f32 %v294, %v375
    %v399 = vsub.f32 %v333, %v375
    %v400 = vadd.f32 %v394, 1e-05
    %v401 = vrsqrt.pop %v400
    %v402 = vmul.f32 %v395, %v401
    %v403 = vmul.f32 %v396, %v401
    %v404 = vmul.f32 %v397, %v401
    %v405 = vmul.f32 %v398, %v401
    %v406 = vmul.f32 %v399, %v401
    %408 = vset.pattern.permute.xlu0 0
    %409 = vperm.xlu0 %408, %v33
    %v410 = vpop.permute.xlu0 %409
    %v412 = vmul.f32 %v402, %v410
    %v413 = vmul.f32 %v403, %v410
    %v414 = vmul.f32 %v404, %v410
    %v415 = vmul.f32 %v405, %v410
    %v416 = vmul.f32 %v406, %v410
    %417 = vset.pattern.permute.xlu0 1
    %418 = vperm.xlu0 %417, %v33
    %v419 = vpop.permute.xlu0 %418
    %v421 = vadd.f32 %v412, %v419
    %v422 = vadd.f32 %v413, %v419
    %v423 = vadd.f32 %v414, %v419
    %v424 = vadd.f32 %v415, %v419
    %v425 = vadd.f32 %v416, %v419
    %v426 = vrot.slane %v421, 4
    %v427 = vrot.slane %v422, 4
    %v428 = vrot.slane %v423, 4
    %v429 = vrot.slane %v424, 4
    %v430 = vrot.slane %v425, 4
    %v431 = vlaneseq
    %v432 = vshrl.u32 %v431, 7
    %vm433 = vcmp.lt.s32.totalorder %v432, 4
    %v434 = vmin.f32 %v421, %v426
    %v435 = vmin.f32 %v422, %v427
    %v436 = vmin.f32 %v423, %v428
    %v437 = vmin.f32 %v424, %v429
    %v438 = vmin.f32 %v425, %v430
    %v439 = vmax.f32 %v421, %v426
    %v440 = vmax.f32 %v422, %v427
    %v441 = vmax.f32 %v423, %v428
    %v442 = vmax.f32 %v424, %v429
    %v443 = vmax.f32 %v425, %v430
    %v444 = vsel %vm433, %v434, %v439
    %v445 = vsel %vm433, %v435, %v440
    %v446 = vsel %vm433, %v436, %v441
    %v447 = vsel %vm433, %v437, %v442
    %v448 = vsel %vm433, %v438, %v443
    %v449 = vld [vmem:[%s2] sm:$0xf]
    %450 = vrot.lane.b32.xlu0 %v444, 127
    %v451 = vpop.permute.xlu0 %450
    %452 = vrot.lane.b32.xlu0 %v445, 127
    %v453 = vpop.permute.xlu0 %452
    %454 = vrot.lane.b32.xlu0 %v446, 127
    %v455 = vpop.permute.xlu0 %454
    %456 = vrot.lane.b32.xlu0 %v447, 127
    %v457 = vpop.permute.xlu0 %456
    %458 = vrot.lane.b32.xlu0 %v448, 127
    %v459 = vpop.permute.xlu0 %458
    %v460 = vsel %vm53, %v457, %v459
    %v461 = vsel %vm53, %v455, %v457
    %v462 = vsel %vm53, %v453, %v455
    %v463 = vsel %vm53, %v451, %v453
    %v464 = vsel %vm53, %v459, %v451
    %465 = vrot.lane.b32.xlu0 %v444, 126
    %v466 = vpop.permute.xlu0 %465
    %467 = vrot.lane.b32.xlu0 %v445, 126
    %v468 = vpop.permute.xlu0 %467
    %469 = vrot.lane.b32.xlu0 %v446, 126
    %v470 = vpop.permute.xlu0 %469
    %471 = vrot.lane.b32.xlu0 %v447, 126
    %v472 = vpop.permute.xlu0 %471
    %473 = vrot.lane.b32.xlu0 %v448, 126
    %v474 = vpop.permute.xlu0 %473
    %v475 = vsel %vm69, %v472, %v474
    %v476 = vsel %vm69, %v470, %v472
    %v477 = vsel %vm69, %v468, %v470
    %v478 = vsel %vm69, %v466, %v468
    %v479 = vsel %vm69, %v474, %v466
    %480 = vrot.lane.b32.xlu0 %v444, 112
    %v481 = vpop.permute.xlu0 %480
    %482 = vrot.lane.b32.xlu0 %v445, 112
    %v483 = vpop.permute.xlu0 %482
    %484 = vrot.lane.b32.xlu0 %v446, 112
    %v485 = vpop.permute.xlu0 %484
    %486 = vrot.lane.b32.xlu0 %v447, 112
    %v487 = vpop.permute.xlu0 %486
    %488 = vrot.lane.b32.xlu0 %v448, 112
    %v489 = vpop.permute.xlu0 %488
    %v490 = vsel %vm85, %v487, %v489
    %v491 = vsel %vm85, %v485, %v487
    %v492 = vsel %vm85, %v483, %v485
    %v493 = vsel %vm85, %v481, %v483
    %v494 = vsel %vm85, %v489, %v481
    %495 = vrot.lane.b32.xlu0 %v444, 111
    %v496 = vpop.permute.xlu0 %495
    %497 = vrot.lane.b32.xlu0 %v445, 111
    %v498 = vpop.permute.xlu0 %497
    %499 = vrot.lane.b32.xlu0 %v446, 111
    %v500 = vpop.permute.xlu0 %499
    %501 = vrot.lane.b32.xlu0 %v447, 111
    %v502 = vpop.permute.xlu0 %501
    %503 = vrot.lane.b32.xlu0 %v448, 111
    %v504 = vpop.permute.xlu0 %503
    %v505 = vsel %vm101, %v502, %v504
    %v506 = vsel %vm101, %v500, %v502
    %v507 = vsel %vm101, %v498, %v500
    %v508 = vsel %vm101, %v496, %v498
    %v509 = vsel %vm101, %v504, %v496
    %510 = vrot.lane.b32.xlu0 %v444, 110
    %v511 = vpop.permute.xlu0 %510
    %512 = vrot.lane.b32.xlu0 %v445, 110
    %v513 = vpop.permute.xlu0 %512
    %514 = vrot.lane.b32.xlu0 %v446, 110
    %v515 = vpop.permute.xlu0 %514
    %516 = vrot.lane.b32.xlu0 %v447, 110
    %v517 = vpop.permute.xlu0 %516
    %518 = vrot.lane.b32.xlu0 %v448, 110
    %v519 = vpop.permute.xlu0 %518
    %v520 = vsel %vm117, %v517, %v519
    %v521 = vsel %vm117, %v515, %v517
    %v522 = vsel %vm117, %v513, %v515
    %v523 = vsel %vm117, %v511, %v513
    %v524 = vsel %vm117, %v519, %v511
    %525 = vrot.lane.b32.xlu0 %v444, 96
    %v526 = vpop.permute.xlu0 %525
    %527 = vrot.lane.b32.xlu0 %v445, 96
    %v528 = vpop.permute.xlu0 %527
    %529 = vrot.lane.b32.xlu0 %v446, 96
    %v530 = vpop.permute.xlu0 %529
    %531 = vrot.lane.b32.xlu0 %v447, 96
    %v532 = vpop.permute.xlu0 %531
    %533 = vrot.lane.b32.xlu0 %v448, 96
    %v534 = vpop.permute.xlu0 %533
    %v535 = vsel %vm133, %v532, %v534
    %v536 = vsel %vm133, %v530, %v532
    %v537 = vsel %vm133, %v528, %v530
    %v538 = vsel %vm133, %v526, %v528
    %v539 = vsel %vm133, %v534, %v526
    %540 = vrot.lane.b32.xlu0 %v444, 95
    %v541 = vpop.permute.xlu0 %540
    %542 = vrot.lane.b32.xlu0 %v445, 95
    %v543 = vpop.permute.xlu0 %542
    %544 = vrot.lane.b32.xlu0 %v446, 95
    %v545 = vpop.permute.xlu0 %544
    %546 = vrot.lane.b32.xlu0 %v447, 95
    %v547 = vpop.permute.xlu0 %546
    %548 = vrot.lane.b32.xlu0 %v448, 95
    %v549 = vpop.permute.xlu0 %548
    %v550 = vsel %vm149, %v547, %v549
    %v551 = vsel %vm149, %v545, %v547
    %v552 = vsel %vm149, %v543, %v545
    %v553 = vsel %vm149, %v541, %v543
    %v554 = vsel %vm149, %v549, %v541
    %555 = vrot.lane.b32.xlu0 %v444, 94
    %v556 = vpop.permute.xlu0 %555
    %557 = vrot.lane.b32.xlu0 %v445, 94
    %v558 = vpop.permute.xlu0 %557
    %559 = vrot.lane.b32.xlu0 %v446, 94
    %v560 = vpop.permute.xlu0 %559
    %561 = vrot.lane.b32.xlu0 %v447, 94
    %v562 = vpop.permute.xlu0 %561
    %563 = vrot.lane.b32.xlu0 %v448, 94
    %v564 = vpop.permute.xlu0 %563
    %v565 = vsel %vm165, %v562, %v564
    %v566 = vsel %vm165, %v560, %v562
    %v567 = vsel %vm165, %v558, %v560
    %v568 = vsel %vm165, %v556, %v558
    %v569 = vsel %vm165, %v564, %v556
    %v570 = vpack.c.bf16 %v463, %v444
    %v571 = vpack.c.bf16 %v462, %v445
    %v572 = vpack.c.bf16 %v461, %v446
    %v573 = vpack.c.bf16 %v460, %v447
    %v574 = vpack.c.bf16 %v464, %v448
    %v575 = vpack.c.bf16 %v493, %v478
    %v576 = vpack.c.bf16 %v492, %v477
    %v577 = vpack.c.bf16 %v491, %v476
    %v578 = vpack.c.bf16 %v490, %v475
    %v579 = vpack.c.bf16 %v494, %v479
    %v580 = vpack.c.bf16 %v523, %v508
    %v581 = vpack.c.bf16 %v522, %v507
    %v582 = vpack.c.bf16 %v521, %v506
    %v583 = vpack.c.bf16 %v520, %v505
    %v584 = vpack.c.bf16 %v524, %v509
    %v585 = vpack.c.bf16 %v553, %v538
    %v586 = vpack.c.bf16 %v552, %v537
    %v587 = vpack.c.bf16 %v551, %v536
    %v588 = vpack.c.bf16 %v550, %v535
    %v589 = vpack.c.bf16 %v554, %v539
    %v590 = vpack.c.bf16 %v568, %v568
    %v591 = vpack.c.bf16 %v567, %v567
    %v592 = vpack.c.bf16 %v566, %v566
    %v593 = vpack.c.bf16 %v565, %v565
    %v594 = vpack.c.bf16 %v569, %v569
    %v596 = vsel %vm196, %v449, 0
    %v599 = vsel %vm200, %v590, 0
    %v602 = vsel %vm200, %v591, 0
    %v605 = vsel %vm200, %v592, 0
    %v608 = vsel %vm200, %v593, 0
    %v611 = vsel %vm200, %v594, 0
    %613 = vmatprep.subr.bf16.mxu0 %v571
    %614 = vmatpush1.bf16.msra.mxu0 %v570
    %615 = vmatprep.subr.bf16.mxu0 %v576
    %616 = vmatpush1.bf16.msra.mxu0 %v575
    %617 = vmatprep.subr.bf16.mxu0 %v581
    %618 = vmatpush1.bf16.msra.mxu0 %v580
    %619 = vmatprep.subr.bf16.mxu0 %v586
    %620 = vmatpush1.bf16.msra.mxu0 %v585
    %621 = vmatprep.subr.bf16.mxu0 %v602
    %622 = vmatpush1.bf16.msra.mxu0 %v599
    %623 = vmatprep.subr.bf16.mxu0 0
    %624 = vmatpush1.bf16.msra.mxu0 0
    %625 = vmatprep.subr.bf16.mxu0 0
    %626 = vmatpush1.bf16.msra.mxu0 0
    %627 = vmatprep.subr.bf16.mxu0 0
    %628 = vmatpush1.bf16.msra.mxu0 0
    %629 = vmatprep.subr.bf16.mxu0 0
    %630 = vmatpush1.bf16.msra.mxu0 0
    %631 = vmatprep.subr.bf16.mxu0 0
    %632 = vmatpush1.bf16.msra.mxu0 0
    %633 = vmatprep.subr.bf16.mxu0 0
    %634 = vmatpush1.bf16.msra.mxu0 0
    %635 = vmatprep.subr.bf16.mxu0 0
    %636 = vmatpush1.bf16.msra.mxu0 0
    %637 = vmatprep.subr.bf16.mxu0 0
    %638 = vmatpush1.bf16.msra.mxu0 0
    %639 = vmatprep.subr.bf16.mxu0 0
    %640 = vmatpush1.bf16.msra.mxu0 0
    %641 = vmatprep.subr.bf16.mxu0 0
    %642 = vmatpush1.bf16.msra.mxu0 0
    %643 = vmatprep.subr.bf16.mxu0 0
    %644 = vmatpush1.bf16.msra.mxu0 0
    %645 = vmatprep.mubr.bf16.mxu0 0
    %646 = vmatmul.mubr.bf16.gmra.mrb[0].mxu0 %v596
    %v647 = vpop.f32.mrb[0].mxu0
    %v648 = vadd.f32 0.0, %v647
    %v649 = vpop.f32.mrb[0].mxu0
    %v650 = vadd.f32 0.0, %v649
    %v651 = vpop.f32.mrb[0].mxu0
    %v652 = vpop.f32.mrb[0].mxu0
    %653 = vdwg.mxu0
    %654 = vmatprep.subr.bf16.mxu0 %v573
    %655 = vmatpush1.bf16.msra.mxu0 %v572
    %656 = vmatprep.subr.bf16.mxu0 %v578
    %657 = vmatpush1.bf16.msra.mxu0 %v577
    %658 = vmatprep.subr.bf16.mxu0 %v583
    %659 = vmatpush1.bf16.msra.mxu0 %v582
    %660 = vmatprep.subr.bf16.mxu0 %v588
    %661 = vmatpush1.bf16.msra.mxu0 %v587
    %662 = vmatprep.subr.bf16.mxu0 %v608
    %663 = vmatpush1.bf16.msra.mxu0 %v605
    %664 = vmatprep.subr.bf16.mxu0 0
    %665 = vmatpush1.bf16.msra.mxu0 0
    %666 = vmatprep.subr.bf16.mxu0 0
    %667 = vmatpush1.bf16.msra.mxu0 0
    %668 = vmatprep.subr.bf16.mxu0 0
    %669 = vmatpush1.bf16.msra.mxu0 0
    %670 = vmatprep.subr.bf16.mxu0 0
    %671 = vmatpush1.bf16.msra.mxu0 0
    %672 = vmatprep.subr.bf16.mxu0 0
    %673 = vmatpush1.bf16.msra.mxu0 0
    %674 = vmatprep.subr.bf16.mxu0 0
    %675 = vmatpush1.bf16.msra.mxu0 0
    %676 = vmatprep.subr.bf16.mxu0 0
    %677 = vmatpush1.bf16.msra.mxu0 0
    %678 = vmatprep.subr.bf16.mxu0 0
    %679 = vmatpush1.bf16.msra.mxu0 0
    %680 = vmatprep.subr.bf16.mxu0 0
    %681 = vmatpush1.bf16.msra.mxu0 0
    %682 = vmatprep.subr.bf16.mxu0 0
    %683 = vmatpush1.bf16.msra.mxu0 0
    %684 = vmatprep.subr.bf16.mxu0 0
    %685 = vmatpush1.bf16.msra.mxu0 0
    %686 = vmatprep.mubr.bf16.mxu0 0
    %687 = vmatmul.mubr.bf16.gmra.mrb[0].mxu0 %v596
    %v688 = vpop.f32.mrb[0].mxu0
    %v689 = vadd.f32 0.0, %v688
    %v690 = vpop.f32.mrb[0].mxu0
    %v691 = vadd.f32 0.0, %v690
    %v692 = vpop.f32.mrb[0].mxu0
    %v693 = vpop.f32.mrb[0].mxu0
    %694 = vdwg.mxu0
    %695 = vmatprep.subr.bf16.mxu0 0
    %696 = vmatpush1.bf16.msra.mxu0 %v574
    %697 = vmatprep.subr.bf16.mxu0 0
    %698 = vmatpush1.bf16.msra.mxu0 %v579
    %699 = vmatprep.subr.bf16.mxu0 0
    %700 = vmatpush1.bf16.msra.mxu0 %v584
    %701 = vmatprep.subr.bf16.mxu0 0
    %702 = vmatpush1.bf16.msra.mxu0 %v589
    %703 = vmatprep.subr.bf16.mxu0 0
    %704 = vmatpush1.bf16.msra.mxu0 %v611
    %705 = vmatprep.subr.bf16.mxu0 0
    %706 = vmatpush1.bf16.msra.mxu0 0
    %707 = vmatprep.subr.bf16.mxu0 0
    %708 = vmatpush1.bf16.msra.mxu0 0
    %709 = vmatprep.subr.bf16.mxu0 0
    %710 = vmatpush1.bf16.msra.mxu0 0
    %711 = vmatprep.subr.bf16.mxu0 0
    %712 = vmatpush1.bf16.msra.mxu0 0
    %713 = vmatprep.subr.bf16.mxu0 0
    %714 = vmatpush1.bf16.msra.mxu0 0
    %715 = vmatprep.subr.bf16.mxu0 0
    %716 = vmatpush1.bf16.msra.mxu0 0
    %717 = vmatprep.subr.bf16.mxu0 0
    %718 = vmatpush1.bf16.msra.mxu0 0
    %719 = vmatprep.subr.bf16.mxu0 0
    %720 = vmatpush1.bf16.msra.mxu0 0
    %721 = vmatprep.subr.bf16.mxu0 0
    %722 = vmatpush1.bf16.msra.mxu0 0
    %723 = vmatprep.subr.bf16.mxu0 0
    %724 = vmatpush1.bf16.msra.mxu0 0
    %725 = vmatprep.subr.bf16.mxu0 0
    %726 = vmatpush1.bf16.msra.mxu0 0
    %727 = vmatprep.mubr.bf16.mxu0 0
    %728 = vmatmul.mubr.bf16.gmra.mrb[0].mxu0 %v596
    %v729 = vpop.f32.mrb[0].mxu0
    %v730 = vadd.f32 0.0, %v729
    %v731 = vpop.f32.mrb[0].mxu0
    %v732 = vpop.f32.mrb[0].mxu0
    %v733 = vpop.f32.mrb[0].mxu0
    %734 = vdwg.mxu0
    %v736 = vlaneseq
    %v737 = vshrl.u32 %v736, 7
    %v738 = vsub.s32 0, %v737
    %v739 = vrot.slane %v30, %v738
    %v740 = vlaneseq
    %v741 = vshrl.u32 %v740, 7
    %v742 = vsub.s32 1, %v741
    %v743 = vrot.slane %v30, %v742
    %v744 = vlaneseq
    %v745 = vshrl.u32 %v744, 7
    %v746 = vsub.s32 2, %v745
    %v747 = vrot.slane %v30, %v746
    %v748 = vlaneseq
    %v749 = vshrl.u32 %v748, 7
    %v750 = vsub.s32 3, %v749
    %v751 = vrot.slane %v30, %v750
    %v752 = vlaneseq
    %v753 = vshrl.u32 %v752, 7
    %v754 = vsub.s32 4, %v753
    %v755 = vrot.slane %v30, %v754
    %v761 = vmul.f32 %v648, %v739
    %v762 = vmul.f32 %v650, %v743
    %v763 = vmul.f32 %v689, %v747
    %v764 = vmul.f32 %v691, %v751
    %v765 = vmul.f32 %v730, %v755
    %v766 = vadd.f32 %v761, %v762
    %v767 = vadd.f32 %v766, %v763
    %v768 = vadd.f32 %v767, %v764
    %v769 = vadd.f32 %v768, %v765
    %770 = vadd.xlane.f32.xlu0 %v769
    %v771 = vpop.xlane.xlu0 %770
    %v772 = vmul.f32 %v771, 0.0034722222
    %v773 = vmul.f32 %v648, %v648
    %v774 = vmul.f32 %v650, %v650
    %v775 = vmul.f32 %v689, %v689
    %v776 = vmul.f32 %v691, %v691
    %v777 = vmul.f32 %v730, %v730
    %v778 = vmul.f32 %v773, %v739
    %v779 = vmul.f32 %v774, %v743
    %v780 = vmul.f32 %v775, %v747
    %v781 = vmul.f32 %v776, %v751
    %v782 = vmul.f32 %v777, %v755
    %v783 = vadd.f32 %v778, %v779
    %v784 = vadd.f32 %v783, %v780
    %v785 = vadd.f32 %v784, %v781
    %v786 = vadd.f32 %v785, %v782
    %787 = vadd.xlane.f32.xlu0 %v786
    %v788 = vpop.xlane.xlu0 %787
    %v789 = vmul.f32 %v788, 0.0034722222
    %v790 = vmul.f32 %v772, %v772
    %v791 = vsub.f32 %v789, %v790
    %v792 = vsub.f32 %v648, %v772
    %v793 = vsub.f32 %v650, %v772
    %v794 = vsub.f32 %v689, %v772
    %v795 = vsub.f32 %v691, %v772
    %v796 = vsub.f32 %v730, %v772
    %v797 = vadd.f32 %v791, 1e-05
    %v798 = vrsqrt.pop %v797
    %v799 = vmul.f32 %v792, %v798
    %v800 = vmul.f32 %v793, %v798
    %v801 = vmul.f32 %v794, %v798
    %v802 = vmul.f32 %v795, %v798
    %v803 = vmul.f32 %v796, %v798
    %804 = vset.pattern.permute.xlu0 2
    %805 = vperm.xlu0 %804, %v33
    %v806 = vpop.permute.xlu0 %805
    %v808 = vmul.f32 %v799, %v806
    %v809 = vmul.f32 %v800, %v806
    %v810 = vmul.f32 %v801, %v806
    %v811 = vmul.f32 %v802, %v806
    %v812 = vmul.f32 %v803, %v806
    %813 = vset.pattern.permute.xlu0 3
    %814 = vperm.xlu0 %813, %v33
    %v815 = vpop.permute.xlu0 %814
    %v817 = vadd.f32 %v808, %v815
    %v818 = vadd.f32 %v809, %v815
    %v819 = vadd.f32 %v810, %v815
    %v820 = vadd.f32 %v811, %v815
    %v821 = vadd.f32 %v812, %v815
    %v822 = vrot.slane %v817, 4
    %v823 = vrot.slane %v818, 4
    %v824 = vrot.slane %v819, 4
    %v825 = vrot.slane %v820, 4
    %v826 = vrot.slane %v821, 4
    %v827 = vmin.f32 %v817, %v822
    %v828 = vmin.f32 %v818, %v823
    %v829 = vmin.f32 %v819, %v824
    %v830 = vmin.f32 %v820, %v825
    %v831 = vmin.f32 %v821, %v826
    %v832 = vmax.f32 %v817, %v822
    %v833 = vmax.f32 %v818, %v823
    %v834 = vmax.f32 %v819, %v824
    %v835 = vmax.f32 %v820, %v825
    %v836 = vmax.f32 %v821, %v826
    %v837 = vsel %vm433, %v827, %v832
    %v838 = vsel %vm433, %v828, %v833
    %v839 = vsel %vm433, %v829, %v834
    %v840 = vsel %vm433, %v830, %v835
    %v841 = vsel %vm433, %v831, %v836
    %v842 = vld [vmem:[%s3] sm:$0x1]
    %843 = vrot.lane.b32.xlu0 %v837, 127
    %v844 = vpop.permute.xlu0 %843
    %845 = vrot.lane.b32.xlu0 %v838, 127
    %v846 = vpop.permute.xlu0 %845
    %847 = vrot.lane.b32.xlu0 %v839, 127
    %v848 = vpop.permute.xlu0 %847
    %849 = vrot.lane.b32.xlu0 %v840, 127
    %v850 = vpop.permute.xlu0 %849
    %851 = vrot.lane.b32.xlu0 %v841, 127
    %v852 = vpop.permute.xlu0 %851
    %v853 = vsel %vm53, %v850, %v852
    %v854 = vsel %vm53, %v848, %v850
    %v855 = vsel %vm53, %v846, %v848
    %v856 = vsel %vm53, %v844, %v846
    %v857 = vsel %vm53, %v852, %v844
    %858 = vrot.lane.b32.xlu0 %v837, 126
    %v859 = vpop.permute.xlu0 %858
    %860 = vrot.lane.b32.xlu0 %v838, 126
    %v861 = vpop.permute.xlu0 %860
    %862 = vrot.lane.b32.xlu0 %v839, 126
    %v863 = vpop.permute.xlu0 %862
    %864 = vrot.lane.b32.xlu0 %v840, 126
    %v865 = vpop.permute.xlu0 %864
    %866 = vrot.lane.b32.xlu0 %v841, 126
    %v867 = vpop.permute.xlu0 %866
    %v868 = vsel %vm69, %v865, %v867
    %v869 = vsel %vm69, %v863, %v865
    %v870 = vsel %vm69, %v861, %v863
    %v871 = vsel %vm69, %v859, %v861
    %v872 = vsel %vm69, %v867, %v859
    %873 = vrot.lane.b32.xlu0 %v837, 112
    %v874 = vpop.permute.xlu0 %873
    %875 = vrot.lane.b32.xlu0 %v838, 112
    %v876 = vpop.permute.xlu0 %875
    %877 = vrot.lane.b32.xlu0 %v839, 112
    %v878 = vpop.permute.xlu0 %877
    %879 = vrot.lane.b32.xlu0 %v840, 112
    %v880 = vpop.permute.xlu0 %879
    %881 = vrot.lane.b32.xlu0 %v841, 112
    %v882 = vpop.permute.xlu0 %881
    %v883 = vsel %vm85, %v880, %v882
    %v884 = vsel %vm85, %v878, %v880
    %v885 = vsel %vm85, %v876, %v878
    %v886 = vsel %vm85, %v874, %v876
    %v887 = vsel %vm85, %v882, %v874
    %888 = vrot.lane.b32.xlu0 %v837, 111
    %v889 = vpop.permute.xlu0 %888
    %890 = vrot.lane.b32.xlu0 %v838, 111
    %v891 = vpop.permute.xlu0 %890
    %892 = vrot.lane.b32.xlu0 %v839, 111
    %v893 = vpop.permute.xlu0 %892
    %894 = vrot.lane.b32.xlu0 %v840, 111
    %v895 = vpop.permute.xlu0 %894
    %896 = vrot.lane.b32.xlu0 %v841, 111
    %v897 = vpop.permute.xlu0 %896
    %v898 = vsel %vm101, %v895, %v897
    %v899 = vsel %vm101, %v893, %v895
    %v900 = vsel %vm101, %v891, %v893
    %v901 = vsel %vm101, %v889, %v891
    %v902 = vsel %vm101, %v897, %v889
    %903 = vrot.lane.b32.xlu0 %v837, 110
    %v904 = vpop.permute.xlu0 %903
    %905 = vrot.lane.b32.xlu0 %v838, 110
    %v906 = vpop.permute.xlu0 %905
    %907 = vrot.lane.b32.xlu0 %v839, 110
    %v908 = vpop.permute.xlu0 %907
    %909 = vrot.lane.b32.xlu0 %v840, 110
    %v910 = vpop.permute.xlu0 %909
    %911 = vrot.lane.b32.xlu0 %v841, 110
    %v912 = vpop.permute.xlu0 %911
    %v913 = vsel %vm117, %v910, %v912
    %v914 = vsel %vm117, %v908, %v910
    %v915 = vsel %vm117, %v906, %v908
    %v916 = vsel %vm117, %v904, %v906
    %v917 = vsel %vm117, %v912, %v904
    %918 = vrot.lane.b32.xlu0 %v837, 96
    %v919 = vpop.permute.xlu0 %918
    %920 = vrot.lane.b32.xlu0 %v838, 96
    %v921 = vpop.permute.xlu0 %920
    %922 = vrot.lane.b32.xlu0 %v839, 96
    %v923 = vpop.permute.xlu0 %922
    %924 = vrot.lane.b32.xlu0 %v840, 96
    %v925 = vpop.permute.xlu0 %924
    %926 = vrot.lane.b32.xlu0 %v841, 96
    %v927 = vpop.permute.xlu0 %926
    %v928 = vsel %vm133, %v925, %v927
    %v929 = vsel %vm133, %v923, %v925
    %v930 = vsel %vm133, %v921, %v923
    %v931 = vsel %vm133, %v919, %v921
    %v932 = vsel %vm133, %v927, %v919
    %933 = vrot.lane.b32.xlu0 %v837, 95
    %v934 = vpop.permute.xlu0 %933
    %935 = vrot.lane.b32.xlu0 %v838, 95
    %v936 = vpop.permute.xlu0 %935
    %937 = vrot.lane.b32.xlu0 %v839, 95
    %v938 = vpop.permute.xlu0 %937
    %939 = vrot.lane.b32.xlu0 %v840, 95
    %v940 = vpop.permute.xlu0 %939
    %941 = vrot.lane.b32.xlu0 %v841, 95
    %v942 = vpop.permute.xlu0 %941
    %v943 = vsel %vm149, %v940, %v942
    %v944 = vsel %vm149, %v938, %v940
    %v945 = vsel %vm149, %v936, %v938
    %v946 = vsel %vm149, %v934, %v936
    %v947 = vsel %vm149, %v942, %v934
    %948 = vrot.lane.b32.xlu0 %v837, 94
    %v949 = vpop.permute.xlu0 %948
    %950 = vrot.lane.b32.xlu0 %v838, 94
    %v951 = vpop.permute.xlu0 %950
    %952 = vrot.lane.b32.xlu0 %v839, 94
    %v953 = vpop.permute.xlu0 %952
    %954 = vrot.lane.b32.xlu0 %v840, 94
    %v955 = vpop.permute.xlu0 %954
    %956 = vrot.lane.b32.xlu0 %v841, 94
    %v957 = vpop.permute.xlu0 %956
    %v958 = vsel %vm165, %v955, %v957
    %v959 = vsel %vm165, %v953, %v955
    %v960 = vsel %vm165, %v951, %v953
    %v961 = vsel %vm165, %v949, %v951
    %v962 = vsel %vm165, %v957, %v949
    %v963 = vpack.c.bf16 %v856, %v837
    %v964 = vpack.c.bf16 %v855, %v838
    %v965 = vpack.c.bf16 %v854, %v839
    %v966 = vpack.c.bf16 %v853, %v840
    %v967 = vpack.c.bf16 %v857, %v841
    %v968 = vpack.c.bf16 %v886, %v871
    %v969 = vpack.c.bf16 %v885, %v870
    %v970 = vpack.c.bf16 %v884, %v869
    %v971 = vpack.c.bf16 %v883, %v868
    %v972 = vpack.c.bf16 %v887, %v872
    %v973 = vpack.c.bf16 %v916, %v901
    %v974 = vpack.c.bf16 %v915, %v900
    %v975 = vpack.c.bf16 %v914, %v899
    %v976 = vpack.c.bf16 %v913, %v898
    %v977 = vpack.c.bf16 %v917, %v902
    %v978 = vpack.c.bf16 %v946, %v931
    %v979 = vpack.c.bf16 %v945, %v930
    %v980 = vpack.c.bf16 %v944, %v929
    %v981 = vpack.c.bf16 %v943, %v928
    %v982 = vpack.c.bf16 %v947, %v932
    %v983 = vpack.c.bf16 %v961, %v961
    %v984 = vpack.c.bf16 %v960, %v960
    %v985 = vpack.c.bf16 %v959, %v959
    %v986 = vpack.c.bf16 %v958, %v958
    %v987 = vpack.c.bf16 %v962, %v962
    %v989 = vsel %vm196, %v842, 0
    %v992 = vsel %vm200, %v983, 0
    %v995 = vsel %vm200, %v984, 0
    %v998 = vsel %vm200, %v985, 0
    %v1001 = vsel %vm200, %v986, 0
    %v1004 = vsel %vm200, %v987, 0
    %1006 = vmatprep.subr.bf16.mxu0 %v964
    %1007 = vmatpush1.bf16.msra.mxu0 %v963
    %1008 = vmatprep.subr.bf16.mxu0 %v969
    %1009 = vmatpush1.bf16.msra.mxu0 %v968
    %1010 = vmatprep.subr.bf16.mxu0 %v974
    %1011 = vmatpush1.bf16.msra.mxu0 %v973
    %1012 = vmatprep.subr.bf16.mxu0 %v979
    %1013 = vmatpush1.bf16.msra.mxu0 %v978
    %1014 = vmatprep.subr.bf16.mxu0 %v995
    %1015 = vmatpush1.bf16.msra.mxu0 %v992
    %1016 = vmatprep.subr.bf16.mxu0 0
    %1017 = vmatpush1.bf16.msra.mxu0 0
    %1018 = vmatprep.subr.bf16.mxu0 0
    %1019 = vmatpush1.bf16.msra.mxu0 0
    %1020 = vmatprep.subr.bf16.mxu0 0
    %1021 = vmatpush1.bf16.msra.mxu0 0
    %1022 = vmatprep.subr.bf16.mxu0 0
    %1023 = vmatpush1.bf16.msra.mxu0 0
    %1024 = vmatprep.subr.bf16.mxu0 0
    %1025 = vmatpush1.bf16.msra.mxu0 0
    %1026 = vmatprep.subr.bf16.mxu0 0
    %1027 = vmatpush1.bf16.msra.mxu0 0
    %1028 = vmatprep.subr.bf16.mxu0 0
    %1029 = vmatpush1.bf16.msra.mxu0 0
    %1030 = vmatprep.subr.bf16.mxu0 0
    %1031 = vmatpush1.bf16.msra.mxu0 0
    %1032 = vmatprep.subr.bf16.mxu0 0
    %1033 = vmatpush1.bf16.msra.mxu0 0
    %1034 = vmatprep.subr.bf16.mxu0 0
    %1035 = vmatpush1.bf16.msra.mxu0 0
    %1036 = vmatprep.subr.bf16.mxu0 0
    %1037 = vmatpush1.bf16.msra.mxu0 0
    %1038 = vmatprep.mubr.bf16.mxu0 0
    %1039 = vmatmul.mubr.bf16.gmra.mrb[0].mxu0 %v989
    %v1040 = vpop.f32.mrb[0].mxu0
    %v1041 = vadd.f32 0.0, %v1040
    %v1042 = vpop.f32.mrb[0].mxu0
    %v1043 = vadd.f32 0.0, %v1042
    %v1044 = vpop.f32.mrb[0].mxu0
    %v1045 = vpop.f32.mrb[0].mxu0
    %1046 = vdwg.mxu0
    %1047 = vmatprep.subr.bf16.mxu0 %v966
    %1048 = vmatpush1.bf16.msra.mxu0 %v965
    %1049 = vmatprep.subr.bf16.mxu0 %v971
    %1050 = vmatpush1.bf16.msra.mxu0 %v970
    %1051 = vmatprep.subr.bf16.mxu0 %v976
    %1052 = vmatpush1.bf16.msra.mxu0 %v975
    %1053 = vmatprep.subr.bf16.mxu0 %v981
    %1054 = vmatpush1.bf16.msra.mxu0 %v980
    %1055 = vmatprep.subr.bf16.mxu0 %v1001
    %1056 = vmatpush1.bf16.msra.mxu0 %v998
    %1057 = vmatprep.subr.bf16.mxu0 0
    %1058 = vmatpush1.bf16.msra.mxu0 0
    %1059 = vmatprep.subr.bf16.mxu0 0
    %1060 = vmatpush1.bf16.msra.mxu0 0
    %1061 = vmatprep.subr.bf16.mxu0 0
    %1062 = vmatpush1.bf16.msra.mxu0 0
    %1063 = vmatprep.subr.bf16.mxu0 0
    %1064 = vmatpush1.bf16.msra.mxu0 0
    %1065 = vmatprep.subr.bf16.mxu0 0
    %1066 = vmatpush1.bf16.msra.mxu0 0
    %1067 = vmatprep.subr.bf16.mxu0 0
    %1068 = vmatpush1.bf16.msra.mxu0 0
    %1069 = vmatprep.subr.bf16.mxu0 0
    %1070 = vmatpush1.bf16.msra.mxu0 0
    %1071 = vmatprep.subr.bf16.mxu0 0
    %1072 = vmatpush1.bf16.msra.mxu0 0
    %1073 = vmatprep.subr.bf16.mxu0 0
    %1074 = vmatpush1.bf16.msra.mxu0 0
    %1075 = vmatprep.subr.bf16.mxu0 0
    %1076 = vmatpush1.bf16.msra.mxu0 0
    %1077 = vmatprep.subr.bf16.mxu0 0
    %1078 = vmatpush1.bf16.msra.mxu0 0
    %1079 = vmatprep.mubr.bf16.mxu0 0
    %1080 = vmatmul.mubr.bf16.gmra.mrb[0].mxu0 %v989
    %v1081 = vpop.f32.mrb[0].mxu0
    %v1082 = vadd.f32 0.0, %v1081
    %v1083 = vpop.f32.mrb[0].mxu0
    %v1084 = vadd.f32 0.0, %v1083
    %v1085 = vpop.f32.mrb[0].mxu0
    %v1086 = vpop.f32.mrb[0].mxu0
    %1087 = vdwg.mxu0
    %1088 = vmatprep.subr.bf16.mxu0 0
    %1089 = vmatpush1.bf16.msra.mxu0 %v967
    %1090 = vmatprep.subr.bf16.mxu0 0
    %1091 = vmatpush1.bf16.msra.mxu0 %v972
    %1092 = vmatprep.subr.bf16.mxu0 0
    %1093 = vmatpush1.bf16.msra.mxu0 %v977
    %1094 = vmatprep.subr.bf16.mxu0 0
    %1095 = vmatpush1.bf16.msra.mxu0 %v982
    %1096 = vmatprep.subr.bf16.mxu0 0
    %1097 = vmatpush1.bf16.msra.mxu0 %v1004
    %1098 = vmatprep.subr.bf16.mxu0 0
    %1099 = vmatpush1.bf16.msra.mxu0 0
    %1100 = vmatprep.subr.bf16.mxu0 0
    %1101 = vmatpush1.bf16.msra.mxu0 0
    %1102 = vmatprep.subr.bf16.mxu0 0
    %1103 = vmatpush1.bf16.msra.mxu0 0
    %1104 = vmatprep.subr.bf16.mxu0 0
    %1105 = vmatpush1.bf16.msra.mxu0 0
    %1106 = vmatprep.subr.bf16.mxu0 0
    %1107 = vmatpush1.bf16.msra.mxu0 0
    %1108 = vmatprep.subr.bf16.mxu0 0
    %1109 = vmatpush1.bf16.msra.mxu0 0
    %1110 = vmatprep.subr.bf16.mxu0 0
    %1111 = vmatpush1.bf16.msra.mxu0 0
    %1112 = vmatprep.subr.bf16.mxu0 0
    %1113 = vmatpush1.bf16.msra.mxu0 0
    %1114 = vmatprep.subr.bf16.mxu0 0
    %1115 = vmatpush1.bf16.msra.mxu0 0
    %1116 = vmatprep.subr.bf16.mxu0 0
    %1117 = vmatpush1.bf16.msra.mxu0 0
    %1118 = vmatprep.subr.bf16.mxu0 0
    %1119 = vmatpush1.bf16.msra.mxu0 0
    %1120 = vmatprep.mubr.bf16.mxu0 0
    %1121 = vmatmul.mubr.bf16.gmra.mrb[0].mxu0 %v989
    %v1122 = vpop.f32.mrb[0].mxu0
    %v1123 = vadd.f32 0.0, %v1122
    %v1124 = vpop.f32.mrb[0].mxu0
    %v1125 = vpop.f32.mrb[0].mxu0
    %v1126 = vpop.f32.mrb[0].mxu0
    %1127 = vdwg.mxu0
    %v1129 = vlaneseq
    %v1130 = vshrl.u32 %v1129, 7
    %v1131 = vsub.s32 0, %v1130
    %v1132 = vrot.slane %v32, %v1131
    %v1133 = vlaneseq
    %v1134 = vshrl.u32 %v1133, 7
    %v1135 = vsub.s32 1, %v1134
    %v1136 = vrot.slane %v32, %v1135
    %v1137 = vlaneseq
    %v1138 = vshrl.u32 %v1137, 7
    %v1139 = vsub.s32 2, %v1138
    %v1140 = vrot.slane %v32, %v1139
    %v1141 = vlaneseq
    %v1142 = vshrl.u32 %v1141, 7
    %v1143 = vsub.s32 3, %v1142
    %v1144 = vrot.slane %v32, %v1143
    %v1145 = vlaneseq
    %v1146 = vshrl.u32 %v1145, 7
    %v1147 = vsub.s32 4, %v1146
    %v1148 = vrot.slane %v32, %v1147
    %v1154 = vmul.f32 %v1041, %v1132
    %v1155 = vmul.f32 %v1043, %v1136
    %v1156 = vmul.f32 %v1082, %v1140
    %v1157 = vmul.f32 %v1084, %v1144
    %v1158 = vmul.f32 %v1123, %v1148
    %vm1159 = vcmask 1040384
    %v1160 = vsel %vm1159, %v1154, 0.0
    %v1161 = vsel %vm1159, %v1155, 0.0
    %v1162 = vadd.f32 %v1160, %v1161
    %v1163 = vsel %vm1159, %v1156, 0.0
    %v1164 = vadd.f32 %v1162, %v1163
    %v1165 = vsel %vm1159, %v1157, 0.0
    %v1166 = vadd.f32 %v1164, %v1165
    %v1167 = vsel %vm1159, %v1158, 0.0
    %v1168 = vadd.f32 %v1166, %v1167
    %1169 = vadd.xlane.f32.xlu0 %v1168
    %v1170 = vpop.xlane.xlu0 %1169
    %v1171 = vmul.f32 %v1170, 0.005
    %v1172 = vmul.f32 %v1041, %v1041
    %v1173 = vmul.f32 %v1043, %v1043
    %v1174 = vmul.f32 %v1082, %v1082
    %v1175 = vmul.f32 %v1084, %v1084
    %v1176 = vmul.f32 %v1123, %v1123
    %v1177 = vmul.f32 %v1172, %v1132
    %v1178 = vmul.f32 %v1173, %v1136
    %v1179 = vmul.f32 %v1174, %v1140
    %v1180 = vmul.f32 %v1175, %v1144
    %v1181 = vmul.f32 %v1176, %v1148
    %v1182 = vsel %vm1159, %v1177, 0.0
    %v1183 = vsel %vm1159, %v1178, 0.0
    %v1184 = vadd.f32 %v1182, %v1183
    %v1185 = vsel %vm1159, %v1179, 0.0
    %v1186 = vadd.f32 %v1184, %v1185
    %v1187 = vsel %vm1159, %v1180, 0.0
    %v1188 = vadd.f32 %v1186, %v1187
    %v1189 = vsel %vm1159, %v1181, 0.0
    %v1190 = vadd.f32 %v1188, %v1189
    %1191 = vadd.xlane.f32.xlu0 %v1190
    %v1192 = vpop.xlane.xlu0 %1191
    %v1193 = vmul.f32 %v1192, 0.005
    %v1194 = vmul.f32 %v1171, %v1171
    %v1195 = vsub.f32 %v1193, %v1194
    %v1196 = vsub.f32 %v1041, %v1171
    %v1197 = vsub.f32 %v1043, %v1171
    %v1198 = vsub.f32 %v1082, %v1171
    %v1199 = vsub.f32 %v1084, %v1171
    %v1200 = vsub.f32 %v1123, %v1171
    %v1201 = vadd.f32 %v1195, 1e-05
    %v1202 = vrsqrt.pop %v1201
    %v1203 = vmul.f32 %v1196, %v1202
    %v1204 = vmul.f32 %v1197, %v1202
    %v1205 = vmul.f32 %v1198, %v1202
    %v1206 = vmul.f32 %v1199, %v1202
    %v1207 = vmul.f32 %v1200, %v1202
    %1209 = vset.pattern.permute.xlu0 4
    %1210 = vperm.xlu0 %1209, %v34
    %v1211 = vpop.permute.xlu0 %1210
    %v1213 = vmul.f32 %v1203, %v1211
    %v1214 = vmul.f32 %v1204, %v1211
    %v1215 = vmul.f32 %v1205, %v1211
    %v1216 = vmul.f32 %v1206, %v1211
    %v1217 = vmul.f32 %v1207, %v1211
    %1218 = vset.pattern.permute.xlu0 5
    %1219 = vperm.xlu0 %1218, %v34
    %v1220 = vpop.permute.xlu0 %1219
    %v1222 = vadd.f32 %v1213, %v1220
    %v1223 = vadd.f32 %v1214, %v1220
    %v1224 = vadd.f32 %v1215, %v1220
    %v1225 = vadd.f32 %v1216, %v1220
    %v1226 = vadd.f32 %v1217, %v1220
    %v1227 = vld [vmem:[%s6] sm:$0xff]
    %v1228 = vld [vmem:[%s6 + $0x8] sm:$0xff]
    %v1229 = vld [vmem:[%s6 + $0x10] sm:$0xff]
    %v1230 = vld [vmem:[%s6 + $0x18] sm:$0xff]
    %v1231 = vld [vmem:[%s6 + $0x20] sm:$0xff]
    %v1232 = vld [vmem:[%s6 + $0x28] sm:$0xff]
    %v1233 = vld [vmem:[%s6 + $0x30] sm:$0xff]
    %v1234 = vld [vmem:[%s6 + $0x38] sm:$0xff]
    %v1235 = vld [vmem:[%s6 + $0x40] sm:$0xff]
    %v1236 = vld [vmem:[%s6 + $0x48] sm:$0xff]
    %v1237 = vld [vmem:[%s6 + $0x50] sm:$0xff]
    %v1238 = vld [vmem:[%s6 + $0x58] sm:$0xff]
    %v1239 = vld [vmem:[%s6 + $0x60] sm:$0xff]
    %v1240 = vld [vmem:[%s6 + $0x68] sm:$0xff]
    %v1241 = vld [vmem:[%s6 + $0x70] sm:$0xff]
    %v1242 = vld [vmem:[%s6 + $0x78] sm:$0xff]
    %v1243 = vld [vmem:[%s6 + $0x80] sm:$0xff]
    %v1244 = vld [vmem:[%s6 + $0x88] sm:$0xff]
    %v1245 = vld [vmem:[%s6 + $0x90] sm:$0xff]
    %v1246 = vld [vmem:[%s6 + $0x98] sm:$0xff]
    %v1247 = vld [vmem:[%s6 + $0xa0] sm:$0xff]
    %v1248 = vld [vmem:[%s6 + $0xa8] sm:$0xff]
    %v1249 = vld [vmem:[%s6 + $0xb0] sm:$0xff]
    %v1250 = vld [vmem:[%s6 + $0xb8] sm:$0xff]
    %v1251 = vld [vmem:[%s6 + $0xc0] sm:$0xff]
    %v1252 = vld [vmem:[%s6 + $0xc8] sm:$0xff]
    %v1253 = vld [vmem:[%s6 + $0xd0] sm:$0xff]
    %v1254 = vld [vmem:[%s6 + $0xd8] sm:$0xff]
    %v1255 = vld [vmem:[%s6 + $0xe0] sm:$0xff]
    %v1256 = vld [vmem:[%s6 + $0xe8] sm:$0xff]
    %v1257 = vld [vmem:[%s6 + $0xf0] sm:$0xff]
    %v1258 = vld [vmem:[%s6 + $0xf8] sm:$0xff]
    %v1259 = vld [vmem:[%s6 + $0x100] sm:$0xff]
    %v1260 = vld [vmem:[%s6 + $0x108] sm:$0xff]
    %v1261 = vld [vmem:[%s6 + $0x110] sm:$0xff]
    %v1262 = vld [vmem:[%s6 + $0x118] sm:$0xff]
    %v1263 = vld [vmem:[%s6 + $0x120] sm:$0xff]
    %v1264 = vld [vmem:[%s6 + $0x128] sm:$0xff]
    %v1265 = vld [vmem:[%s6 + $0x130] sm:$0xff]
    %v1266 = vld [vmem:[%s6 + $0x138] sm:$0xff]
    %v1267 = vld [vmem:[%s6 + $0x140] sm:$0xff]
    %v1268 = vld [vmem:[%s6 + $0x148] sm:$0xff]
    %v1269 = vld [vmem:[%s6 + $0x150] sm:$0xff]
    %v1270 = vld [vmem:[%s6 + $0x158] sm:$0xff]
    %v1271 = vld [vmem:[%s6 + $0x160] sm:$0xff]
    %v1272 = vld [vmem:[%s6 + $0x168] sm:$0xff]
    %v1273 = vld [vmem:[%s6 + $0x170] sm:$0xff]
    %v1274 = vld [vmem:[%s6 + $0x178] sm:$0xff]
    %v1275 = vld [vmem:[%s6 + $0x180] sm:$0xff]
    %v1276 = vld [vmem:[%s6 + $0x188] sm:$0xff]
    %v1277 = vld [vmem:[%s6 + $0x190] sm:$0xff]
    %v1278 = vld [vmem:[%s6 + $0x198] sm:$0xff]
    %v1279 = vld [vmem:[%s6 + $0x1a0] sm:$0xff]
    %v1280 = vld [vmem:[%s6 + $0x1a8] sm:$0xff]
    %v1281 = vld [vmem:[%s6 + $0x1b0] sm:$0xff]
    %v1282 = vld [vmem:[%s6 + $0x1b8] sm:$0xff]
    %v1283 = vld [vmem:[%s6 + $0x1c0] sm:$0xff]
    %v1284 = vld [vmem:[%s6 + $0x1c8] sm:$0xff]
    %v1285 = vld [vmem:[%s6 + $0x1d0] sm:$0xff]
    %v1286 = vld [vmem:[%s6 + $0x1d8] sm:$0xff]
    %v1287 = vld [vmem:[%s6 + $0x1e0] sm:$0xff]
    %v1288 = vld [vmem:[%s6 + $0x1e8] sm:$0xff]
    %v1289 = vld [vmem:[%s6 + $0x1f0] sm:$0xff]
    %v1290 = vld [vmem:[%s6 + $0x1f8] sm:$0xff]
    %v1291 = vld [vmem:[%s6 + $0x200] sm:$0xff]
    %v1292 = vld [vmem:[%s6 + $0x208] sm:$0xff]
    %v1293 = vld [vmem:[%s6 + $0x210] sm:$0xff]
    %v1294 = vld [vmem:[%s6 + $0x218] sm:$0xff]
    %v1295 = vld [vmem:[%s6 + $0x220] sm:$0xff]
    %v1296 = vld [vmem:[%s6 + $0x228] sm:$0xff]
    %v1297 = vld [vmem:[%s6 + $0x230] sm:$0xff]
    %v1298 = vld [vmem:[%s6 + $0x238] sm:$0xff]
    %v1299 = vld [vmem:[%s6 + $0x240] sm:$0xff]
    %v1300 = vld [vmem:[%s6 + $0x248] sm:$0xff]
    %v1301 = vld [vmem:[%s6 + $0x250] sm:$0xff]
    %v1302 = vld [vmem:[%s6 + $0x258] sm:$0xff]
    %v1303 = vld [vmem:[%s6 + $0x260] sm:$0xff]
    %v1304 = vld [vmem:[%s6 + $0x268] sm:$0xff]
    %v1305 = vld [vmem:[%s6 + $0x270] sm:$0xff]
    %v1306 = vld [vmem:[%s6 + $0x278] sm:$0xff]
    %1307 = vset.pattern.permute.xlu0 6
    %1308 = vperm.xlu0 %1307, %v34
    %v1309 = vpop.permute.xlu0 %1308
    %1311 = vmatprep.subr.mxu0 0.0
    %1312 = vmatpush1.msra.mxu0 %v1227
    %1313 = vmatprep.subr.mxu0 0.0
    %1314 = vmatpush1.msra.mxu0 %v1228
    %1315 = vmatprep.subr.mxu0 0.0
    %1316 = vmatpush1.msra.mxu0 %v1229
    %1317 = vmatprep.subr.mxu0 0.0
    %1318 = vmatpush1.msra.mxu0 %v1230
    %1319 = vmatprep.subr.mxu0 0.0
    %1320 = vmatpush1.msra.mxu0 %v1231
    %1321 = vmatprep.subr.mxu0 0.0
    %1322 = vmatpush1.msra.mxu0 %v1232
    %1323 = vmatprep.subr.mxu0 0.0
    %1324 = vmatpush1.msra.mxu0 %v1233
    %1325 = vmatprep.subr.mxu0 0.0
    %1326 = vmatpush1.msra.mxu0 %v1234
    %1327 = vmatprep.subr.mxu0 0.0
    %1328 = vmatpush1.msra.mxu0 %v1235
    %1329 = vmatprep.subr.mxu0 0.0
    %1330 = vmatpush1.msra.mxu0 %v1236
    %1331 = vmatprep.subr.mxu0 0.0
    %1332 = vmatpush1.msra.mxu0 %v1237
    %1333 = vmatprep.subr.mxu0 0.0
    %1334 = vmatpush1.msra.mxu0 %v1238
    %1335 = vmatprep.subr.mxu0 0.0
    %1336 = vmatpush1.msra.mxu0 %v1239
    %1337 = vmatprep.subr.mxu0 0.0
    %1338 = vmatpush1.msra.mxu0 %v1240
    %1339 = vmatprep.subr.mxu0 0.0
    %1340 = vmatpush1.msra.mxu0 %v1241
    %1341 = vmatprep.subr.mxu0 0.0
    %1342 = vmatpush1.msra.mxu0 %v1242
    %1343 = vmatprep.subr.mxu0 0.0
    %1344 = vmatpush1.msra.mxu0 %v1243
    %1345 = vmatprep.subr.mxu0 0.0
    %1346 = vmatpush1.msra.mxu0 %v1244
    %1347 = vmatprep.subr.mxu0 0.0
    %1348 = vmatpush1.msra.mxu0 %v1245
    %1349 = vmatprep.subr.mxu0 0.0
    %1350 = vmatpush1.msra.mxu0 %v1246
    %1351 = vmatprep.subr.mxu0 0.0
    %1352 = vmatpush1.msra.mxu0 %v1247
    %1353 = vmatprep.subr.mxu0 0.0
    %1354 = vmatpush1.msra.mxu0 %v1248
    %1355 = vmatprep.subr.mxu0 0.0
    %1356 = vmatpush1.msra.mxu0 %v1249
    %1357 = vmatprep.subr.mxu0 0.0
    %1358 = vmatpush1.msra.mxu0 %v1250
    %1359 = vmatprep.subr.mxu0 0.0
    %1360 = vmatpush1.msra.mxu0 %v1251
    %1361 = vmatprep.subr.mxu0 0.0
    %1362 = vmatpush1.msra.mxu0 %v1252
    %1363 = vmatprep.subr.mxu0 0.0
    %1364 = vmatpush1.msra.mxu0 %v1253
    %1365 = vmatprep.subr.mxu0 0.0
    %1366 = vmatpush1.msra.mxu0 %v1254
    %1367 = vmatprep.subr.mxu0 0.0
    %1368 = vmatpush1.msra.mxu0 %v1255
    %1369 = vmatprep.subr.mxu0 0.0
    %1370 = vmatpush1.msra.mxu0 %v1256
    %1371 = vmatprep.subr.mxu0 0.0
    %1372 = vmatpush1.msra.mxu0 %v1257
    %1373 = vmatprep.subr.mxu0 0.0
    %1374 = vmatpush1.msra.mxu0 %v1258
    %1375 = vmatprep.mubr.f32.mxu0 %v1223
    %1376 = vmatmul.mubr.f32.gmra.mrb[0].mxu0 %v1222
    %v1377 = vpop.f32.mrb[0].mxu0
    %v1378 = vadd.f32 %v1309, %v1377
    %v1379 = vpop.f32.mrb[0].mxu0
    %1380 = vdwg.mxu0
    %1381 = vmatprep.subr.mxu0 0.0
    %1382 = vmatpush1.msra.mxu0 %v1259
    %1383 = vmatprep.subr.mxu0 0.0
    %1384 = vmatpush1.msra.mxu0 %v1260
    %1385 = vmatprep.subr.mxu0 0.0
    %1386 = vmatpush1.msra.mxu0 %v1261
    %1387 = vmatprep.subr.mxu0 0.0
    %1388 = vmatpush1.msra.mxu0 %v1262
    %1389 = vmatprep.subr.mxu0 0.0
    %1390 = vmatpush1.msra.mxu0 %v1263
    %1391 = vmatprep.subr.mxu0 0.0
    %1392 = vmatpush1.msra.mxu0 %v1264
    %1393 = vmatprep.subr.mxu0 0.0
    %1394 = vmatpush1.msra.mxu0 %v1265
    %1395 = vmatprep.subr.mxu0 0.0
    %1396 = vmatpush1.msra.mxu0 %v1266
    %1397 = vmatprep.subr.mxu0 0.0
    %1398 = vmatpush1.msra.mxu0 %v1267
    %1399 = vmatprep.subr.mxu0 0.0
    %1400 = vmatpush1.msra.mxu0 %v1268
    %1401 = vmatprep.subr.mxu0 0.0
    %1402 = vmatpush1.msra.mxu0 %v1269
    %1403 = vmatprep.subr.mxu0 0.0
    %1404 = vmatpush1.msra.mxu0 %v1270
    %1405 = vmatprep.subr.mxu0 0.0
    %1406 = vmatpush1.msra.mxu0 %v1271
    %1407 = vmatprep.subr.mxu0 0.0
    %1408 = vmatpush1.msra.mxu0 %v1272
    %1409 = vmatprep.subr.mxu0 0.0
    %1410 = vmatpush1.msra.mxu0 %v1273
    %1411 = vmatprep.subr.mxu0 0.0
    %1412 = vmatpush1.msra.mxu0 %v1274
    %1413 = vmatprep.subr.mxu0 0.0
    %1414 = vmatpush1.msra.mxu0 %v1275
    %1415 = vmatprep.subr.mxu0 0.0
    %1416 = vmatpush1.msra.mxu0 %v1276
    %1417 = vmatprep.subr.mxu0 0.0
    %1418 = vmatpush1.msra.mxu0 %v1277
    %1419 = vmatprep.subr.mxu0 0.0
    %1420 = vmatpush1.msra.mxu0 %v1278
    %1421 = vmatprep.subr.mxu0 0.0
    %1422 = vmatpush1.msra.mxu0 %v1279
    %1423 = vmatprep.subr.mxu0 0.0
    %1424 = vmatpush1.msra.mxu0 %v1280
    %1425 = vmatprep.subr.mxu0 0.0
    %1426 = vmatpush1.msra.mxu0 %v1281
    %1427 = vmatprep.subr.mxu0 0.0
    %1428 = vmatpush1.msra.mxu0 %v1282
    %1429 = vmatprep.subr.mxu0 0.0
    %1430 = vmatpush1.msra.mxu0 %v1283
    %1431 = vmatprep.subr.mxu0 0.0
    %1432 = vmatpush1.msra.mxu0 %v1284
    %1433 = vmatprep.subr.mxu0 0.0
    %1434 = vmatpush1.msra.mxu0 %v1285
    %1435 = vmatprep.subr.mxu0 0.0
    %1436 = vmatpush1.msra.mxu0 %v1286
    %1437 = vmatprep.subr.mxu0 0.0
    %1438 = vmatpush1.msra.mxu0 %v1287
    %1439 = vmatprep.subr.mxu0 0.0
    %1440 = vmatpush1.msra.mxu0 %v1288
    %1441 = vmatprep.subr.mxu0 0.0
    %1442 = vmatpush1.msra.mxu0 %v1289
    %1443 = vmatprep.subr.mxu0 0.0
    %1444 = vmatpush1.msra.mxu0 %v1290
    %1445 = vmatprep.mubr.f32.mxu0 %v1225
    %1446 = vmatmul.mubr.f32.gmra.mrb[0].mxu0 %v1224
    %v1447 = vpop.f32.mrb[0].mxu0
    %v1448 = vadd.f32 %v1378, %v1447
    %v1449 = vpop.f32.mrb[0].mxu0
    %1450 = vdwg.mxu0
    %1451 = vmatprep.subr.mxu0 0.0
    %1452 = vmatpush1.msra.mxu0 %v1291
    %1453 = vmatprep.subr.mxu0 0.0
    %1454 = vmatpush1.msra.mxu0 %v1292
    %1455 = vmatprep.subr.mxu0 0.0
    %1456 = vmatpush1.msra.mxu0 %v1293
    %1457 = vmatprep.subr.mxu0 0.0
    %1458 = vmatpush1.msra.mxu0 %v1294
    %1459 = vmatprep.subr.mxu0 0.0
    %1460 = vmatpush1.msra.mxu0 %v1295
    %1461 = vmatprep.subr.mxu0 0.0
    %1462 = vmatpush1.msra.mxu0 %v1296
    %1463 = vmatprep.subr.mxu0 0.0
    %1464 = vmatpush1.msra.mxu0 %v1297
    %1465 = vmatprep.subr.mxu0 0.0
    %1466 = vmatpush1.msra.mxu0 %v1298
    %1467 = vmatprep.subr.mxu0 0.0
    %1468 = vmatpush1.msra.mxu0 %v1299
    %1469 = vmatprep.subr.mxu0 0.0
    %1470 = vmatpush1.msra.mxu0 %v1300
    %1471 = vmatprep.subr.mxu0 0.0
    %1472 = vmatpush1.msra.mxu0 %v1301
    %1473 = vmatprep.subr.mxu0 0.0
    %1474 = vmatpush1.msra.mxu0 %v1302
    %1475 = vmatprep.subr.mxu0 0.0
    %1476 = vmatpush1.msra.mxu0 %v1303
    %1477 = vmatprep.subr.mxu0 0.0
    %1478 = vmatpush1.msra.mxu0 %v1304
    %1479 = vmatprep.subr.mxu0 0.0
    %1480 = vmatpush1.msra.mxu0 %v1305
    %1481 = vmatprep.subr.mxu0 0.0
    %1482 = vmatpush1.msra.mxu0 %v1306
    %1483 = vmatprep.subr.mxu0 0.0
    %1484 = vmatpush1.msra.mxu0 0.0
    %1485 = vmatprep.subr.mxu0 0.0
    %1486 = vmatpush1.msra.mxu0 0.0
    %1487 = vmatprep.subr.mxu0 0.0
    %1488 = vmatpush1.msra.mxu0 0.0
    %1489 = vmatprep.subr.mxu0 0.0
    %1490 = vmatpush1.msra.mxu0 0.0
    %1491 = vmatprep.subr.mxu0 0.0
    %1492 = vmatpush1.msra.mxu0 0.0
    %1493 = vmatprep.subr.mxu0 0.0
    %1494 = vmatpush1.msra.mxu0 0.0
    %1495 = vmatprep.subr.mxu0 0.0
    %1496 = vmatpush1.msra.mxu0 0.0
    %1497 = vmatprep.subr.mxu0 0.0
    %1498 = vmatpush1.msra.mxu0 0.0
    %1499 = vmatprep.subr.mxu0 0.0
    %1500 = vmatpush1.msra.mxu0 0.0
    %1501 = vmatprep.subr.mxu0 0.0
    %1502 = vmatpush1.msra.mxu0 0.0
    %1503 = vmatprep.subr.mxu0 0.0
    %1504 = vmatpush1.msra.mxu0 0.0
    %1505 = vmatprep.subr.mxu0 0.0
    %1506 = vmatpush1.msra.mxu0 0.0
    %1507 = vmatprep.subr.mxu0 0.0
    %1508 = vmatpush1.msra.mxu0 0.0
    %1509 = vmatprep.subr.mxu0 0.0
    %1510 = vmatpush1.msra.mxu0 0.0
    %1511 = vmatprep.subr.mxu0 0.0
    %1512 = vmatpush1.msra.mxu0 0.0
    %1513 = vmatprep.subr.mxu0 0.0
    %1514 = vmatpush1.msra.mxu0 0.0
    %1515 = vmatprep.mubr.f32.mxu0 0.0
    %1516 = vmatmul.mubr.f32.gmra.mrb[0].mxu0 %v1226
    %v1517 = vpop.f32.mrb[0].mxu0
    %v1518 = vadd.f32 %v1448, %v1517
    %v1519 = vpop.f32.mrb[0].mxu0
    %1520 = vdwg.mxu0
    %vm1521 = vcmask 8192
    %1522 = vst.msk [vmem:[#allocation2] sm:$0x1] %vm1521, %v1518
    // Predicated region
    $region30: #{tpu_custom_call.1} parent=1 // pred_check
      _
    $region31: #{tpu_custom_call.1} parent=1 // pred_check_branch
      %1524 = sbr.rel (0) target = $region33
    $region32: #{tpu_custom_call.1} parent=1 // pred_region
      %s1526 = ssub.s32 16, 16
      %1527 = vsyncadd [#allocation3], %s1526
      %s1529 = sshll.u32 [#allocation2], 4
      %s1530 = int_to_ptr.vmem [resolvable:$true] %s1529
      %1532 = dma.vmem_to_hbm [thread:$0]  %s1530, 16, %s7, [#allocation3]
    $region33: #{tpu_custom_call.1} parent=1 // pred_fallthru
      _
    // Predicated region
    $region34: #{tpu_custom_call.1} parent=1 // pred_check
      _
    $region35: #{tpu_custom_call.1} parent=1 // pred_check_branch
      %1534 = sbr.rel (0) target = $region37
    $region36: #{tpu_custom_call.1} parent=1 // pred_region
      %1535 = dma.done [#allocation3], 16
    $region37: #{tpu_custom_call.1} parent=1 // pred_fallthru
      _
    %1536 = vsyncpa [#allocation3], 1

</llo_original>
